<compile_context>
chip_gen: v7x
topology: tpu7x:2x2x1
jax: 0.10.0
libtpu: 0.0.40
codegen_flags: <defaults>
</compile_context>

<pallas_src>
import numpy as np
import jax
import jax.numpy as jnp
from jax import lax
from jax.experimental import pallas as pl
from jax.experimental.pallas import tpu as pltpu


# ---------------------------------------------------------------------------
# Pallas kernels
# ---------------------------------------------------------------------------

def _pool_kernel(x_ref, rrow_ref, rcolt_ref, o_ref):
    """One image per grid step: pool every (H, W) plane straight down to (7, 7).

    x_ref    : (1, N, H, W) bf16  -- N = B*C planes of one image
    rrow_ref : (7, H)       f32   -- fused (area-resize o crop o pool188->112 o pool112->7), rows
    rcolt_ref: (W, 7)       f32   -- transpose of the fused column operator (precomputed host-side)
    o_ref    : (1, N, 7, 7) f32
    """
    rrow = rrow_ref[...]
    rcolt = rcolt_ref[...]
    n_planes = x_ref.shape[1]
    for n in range(n_planes):                                        # N is small & static
        xn = x_ref[0, n].astype(jnp.float32)                         # (H, W), f32 accumulate
        t = jnp.dot(rrow, xn, preferred_element_type=jnp.float32)    # (7, W)
        o_ref[0, n] = jnp.dot(t, rcolt,
                              preferred_element_type=jnp.float32)    # (7, 7)


def _embed_loss_kernel(flat_ref, w_ref, b_ref, loss_ref):
    """Linear(147 -> 512) + L2 norm for both images, then loss = 1 - <y0, x0>.

    flat_ref: (2, B, 147) f32   [0] = synth features, [1] = target features
    w_ref   : (147, 512)  f32
    b_ref   : (1, 512)    f32
    loss_ref: (1, 1)      f32
    """
    w = w_ref[...]
    b = b_ref[...]
    xe = jnp.dot(flat_ref[0], w, preferred_element_type=jnp.float32) + b   # (B, 512)
    ye = jnp.dot(flat_ref[1], w, preferred_element_type=jnp.float32) + b   # (B, 512)
    xn = xe * lax.rsqrt(jnp.sum(xe * xe, axis=-1, keepdims=True) + 1e-12)  # eps-guarded L2 norm
    yn = ye * lax.rsqrt(jnp.sum(ye * ye, axis=-1, keepdims=True) + 1e-12)
    # forward of `1 - y_feats.detach().dot(x_feats)` on sample 0
    d = jnp.sum(yn[0:1, :] * xn[0:1, :], keepdims=True)                    # (1, 1)
    loss_ref[...] = 1.0 - d


# ---------------------------------------------------------------------------
# Host-side operator construction
# ---------------------------------------------------------------------------

def _adaptive_pool_matrix(in_size: int, out_size: int) -> np.ndarray:
    """Row-stochastic P so that P @ X @ P^T == AdaptiveAvgPool2d(out_size)(X)."""
    P = np.zeros((out_size, in_size), dtype=np.float32)
    for i in range(out_size):
        s = (i * in_size) // out_size
        e = ((i + 1) * in_size + out_size - 1) // out_size   # ceil
        P[i, s:e] = 1.0 / float(e - s)
    return P


# ---------------------------------------------------------------------------
# IDLoss module equivalent
# ---------------------------------------------------------------------------

class IDLossPallas:
    def __init__(self, key):
        kw, kb = jax.random.split(key)
        # exact AdaptiveAvgPool2d((112,112)) on the 188x188 crop, and the synthetic
        # backbone-body 112->7 pool; composed into a single 188->7 operator later.
        self._P112 = _adaptive_pool_matrix(188, 112)
        self._Q7 = _adaptive_pool_matrix(112, 7)
        # TODO(synk): real IR-SE50 weights unavailable; synthetic output head
        # Linear(3*7*7 -> 512) matching the embedding interface.
        self.head_w = jax.random.normal(kw, (3 * 7 * 7, 512), jnp.float32) * 0.05
        self.head_b = jax.random.normal(kb, (1, 512), jnp.float32) * 0.01
        self._op_cache = {}
        self._forward_jit = jax.jit(self._forward)

    # --- fused spatial operators (resize + crop + both pools), built once per (H, W)
    def _pool_operators(self, H, W):
        key = (H, W)
        if key not in self._op_cache:
            if H > 256:  # F.interpolate(mode='area') to (256, 256) == adaptive avg pool
                a_r = _adaptive_pool_matrix(H, 256)
                a_c = _adaptive_pool_matrix(W, 256)
            else:
                a_r = np.eye(H, dtype=np.float32)
                a_c = np.eye(W, dtype=np.float32)
            c_r = a_r[35:223, :]                    # crop rows 35:223   -> (188, H)
            c_c = a_c[32:220, :]                    # crop cols 32:220   -> (188, W)
            assert c_r.shape[0] == 188 and c_c.shape[0] == 188, "input too small for crop"
            q = self._Q7 @ self._P112               # (7, 188): 188 -> 112 -> 7, composed
            r_row = np.ascontiguousarray(q @ c_r)   # (7, H)
            r_colt = np.ascontiguousarray((q @ c_c).T)   # (W, 7), transposed host-side
            self._op_cache[key] = (jnp.asarray(r_row), jnp.asarray(r_colt))
        return self._op_cache[key]

    # --- full forward (jitted so stack/reshape/cast fuse into one XLA pass)
    def _forward(self, synth_image, target_image):
        assert synth_image.shape == target_image.shape
        B, C, H, W = synth_image.shape
        assert C == 3, "facenet head expects 3-channel images"
        N = B * C
        r_row, r_colt = self._pool_operators(H, W)

        # Both images in one batch; bf16 at the kernel boundary halves HBM traffic.
        planes = jnp.stack([synth_image, target_image]).reshape(2, N, H, W)
        planes = planes.astype(jnp.bfloat16)

        # Kernel 1: fused resize+crop+pool(188->112->7) for all planes of an image,
        # one image per grid step ("parallel" -> both TensorCores on v7x).
        pooled = pl.pallas_call(
            _pool_kernel,
            out_shape=jax.ShapeDtypeStruct((2, N, 7, 7), jnp.float32),
            grid=(2,),
            in_specs=[
                pl.BlockSpec((1, N, H, W), lambda i: (i, 0, 0, 0)),
                pl.BlockSpec((7, H), lambda i: (0, 0)),
                pl.BlockSpec((W, 7), lambda i: (0, 0)),
            ],
            out_specs=pl.BlockSpec((1, N, 7, 7), lambda i: (i, 0, 0, 0)),
            compiler_params=pltpu.CompilerParams(
                dimension_semantics=("parallel",)),
        )(planes, r_row, r_colt)

        # tiny (2*B*147 floats) glue reshape between the two calls
        flat = pooled.reshape(2, B, C * 7 * 7)

        # Kernel 2: fused Linear head + L2 norm (both images) + ID loss.
        loss = pl.pallas_call(
            _embed_loss_kernel,
            out_shape=jax.ShapeDtypeStruct((1, 1), jnp.float32),
            grid=(1,),
            in_specs=[
                pl.BlockSpec((2, B, C * 7 * 7), lambda i: (0, 0, 0)),
                pl.BlockSpec((C * 7 * 7, 512), lambda i: (0, 0)),
                pl.BlockSpec((1, 512), lambda i: (0, 0)),
            ],
            out_specs=pl.BlockSpec((1, 1), lambda i: (0, 0)),
        )(flat, self.head_w, self.head_b)
        return loss[0, 0]

    def __call__(self, synth_image, target_image):
        return self._forward_jit(synth_image, target_image)


# ---------------------------------------------------------------------------
# Main
# ---------------------------------------------------------------------------

if __name__ == "__main__":
    key = jax.random.PRNGKey(0)
    k_params, k_synth, k_target = jax.random.split(key, 3)

    model = IDLossPallas(k_params)

    # batch=2, channels=3, spatial=256 (crop indices 35:223 / 32:220 require >=223)
    synth_image = jax.random.normal(k_synth, (2, 3, 256, 256), jnp.float32)
    target_image = jax.random.normal(k_target, (2, 3, 256, 256), jnp.float32)

    loss = model(synth_image, target_image)
    loss = jax.block_until_ready(loss)

    assert loss.shape == () and jnp.isfinite(loss)
    print("KERNEL_OK")
</pallas_src>

<mosaic_0001>
module attributes {stable_mosaic.version = 11 : i64} {
  func.func @_pool_kernel(%arg0: i32, %arg1: memref<1x6x256x256xbf16, #tpu.memory_space<vmem>>, %arg2: memref<7x256xf32, #tpu.memory_space<vmem>>, %arg3: memref<256x7xf32, #tpu.memory_space<vmem>>, %arg4: memref<1x6x7x7xf32, #tpu.memory_space<vmem>>) attributes {dimension_semantics = [#tpu.dimension_semantics<parallel>], iteration_bounds = array<i64: 2>, scalar_prefetch = 0 : i64, scratch_operands = 0 : i64, tpu.core_type = #tpu.core_type<tc>, window_params = [{transform_indices = @transform_0, window_bounds = array<i64: 1, 6, 256, 256>}, {pipeline_mode = #tpu.pipeline_mode<synchronous>, transform_indices = @transform_1, window_bounds = array<i64: 7, 256>}, {pipeline_mode = #tpu.pipeline_mode<synchronous>, transform_indices = @transform_2, window_bounds = array<i64: 256, 7>}, {transform_indices = @transform_3, window_bounds = array<i64: 1, 6, 7, 7>}]} {
    %c0 = arith.constant 0 : index
    %c0_0 = arith.constant 0 : index
    %0 = vector.load %arg2[%c0, %c0_0] : memref<7x256xf32, #tpu.memory_space<vmem>>, vector<7x256xf32>
    %c0_1 = arith.constant 0 : index
    %c0_2 = arith.constant 0 : index
    %1 = vector.load %arg3[%c0_1, %c0_2] : memref<256x7xf32, #tpu.memory_space<vmem>>, vector<256x7xf32>
    %c0_3 = arith.constant 0 : index
    %c0_4 = arith.constant 0 : index
    %c0_5 = arith.constant 0 : index
    %c0_6 = arith.constant 0 : index
    %2 = vector.load %arg1[%c0_3, %c0_4, %c0_5, %c0_6] : memref<1x6x256x256xbf16, #tpu.memory_space<vmem>>, vector<1x1x256x256xbf16>
    %3 = vector.shape_cast %2 : vector<1x1x256x256xbf16> to vector<256x256xbf16>
    %4 = arith.extf %3 : vector<256x256xbf16> to vector<256x256xf32>
    %cst = arith.constant dense<0.000000e+00> : vector<7x256xf32>
    %5 = tpu.matmul %0, %4, %cst {dimension_numbers = #tpu.dot_dimension_numbers<[1], [0], [0], [1], [0, 0, 1, 1], [], []>} : vector<7x256xf32>, vector<256x256xf32>, vector<7x256xf32> -> vector<7x256xf32>
    %cst_7 = arith.constant dense<0.000000e+00> : vector<7x7xf32>
    %6 = tpu.matmul %5, %1, %cst_7 {dimension_numbers = #tpu.dot_dimension_numbers<[1], [0], [0], [1], [0, 0, 1, 1], [], []>} : vector<7x256xf32>, vector<256x7xf32>, vector<7x7xf32> -> vector<7x7xf32>
    %c0_8 = arith.constant 0 : index
    %c0_9 = arith.constant 0 : index
    %c0_10 = arith.constant 0 : index
    %c0_11 = arith.constant 0 : index
    %7 = vector.load %arg4[%c0_8, %c0_9, %c0_10, %c0_11] : memref<1x6x7x7xf32, #tpu.memory_space<vmem>>, vector<1x1x7x7xf32>
    %8 = vector.shape_cast %7 : vector<1x1x7x7xf32> to vector<7x7xf32>
    %9 = vector.shape_cast %6 : vector<7x7xf32> to vector<1x1x7x7xf32>
    tpu.vector_store %arg4[%c0_8, %c0_9, %c0_10, %c0_11], %9 {strides = array<i32>} : memref<1x6x7x7xf32, #tpu.memory_space<vmem>>, vector<1x1x7x7xf32>,
    %c0_12 = arith.constant 0 : index
    %c1 = arith.constant 1 : index
    %c0_13 = arith.constant 0 : index
    %c0_14 = arith.constant 0 : index
    %10 = vector.load %arg1[%c0_12, %c1, %c0_13, %c0_14] : memref<1x6x256x256xbf16, #tpu.memory_space<vmem>>, vector<1x1x256x256xbf16>
    %11 = vector.shape_cast %10 : vector<1x1x256x256xbf16> to vector<256x256xbf16>
    %12 = arith.extf %11 : vector<256x256xbf16> to vector<256x256xf32>
    %cst_15 = arith.constant dense<0.000000e+00> : vector<7x256xf32>
    %13 = tpu.matmul %0, %12, %cst_15 {dimension_numbers = #tpu.dot_dimension_numbers<[1], [0], [0], [1], [0, 0, 1, 1], [], []>} : vector<7x256xf32>, vector<256x256xf32>, vector<7x256xf32> -> vector<7x256xf32>
    %cst_16 = arith.constant dense<0.000000e+00> : vector<7x7xf32>
    %14 = tpu.matmul %13, %1, %cst_16 {dimension_numbers = #tpu.dot_dimension_numbers<[1], [0], [0], [1], [0, 0, 1, 1], [], []>} : vector<7x256xf32>, vector<256x7xf32>, vector<7x7xf32> -> vector<7x7xf32>
    %c0_17 = arith.constant 0 : index
    %c1_18 = arith.constant 1 : index
    %c0_19 = arith.constant 0 : index
    %c0_20 = arith.constant 0 : index
    %15 = vector.load %arg4[%c0_17, %c1_18, %c0_19, %c0_20] : memref<1x6x7x7xf32, #tpu.memory_space<vmem>>, vector<1x1x7x7xf32>
    %16 = vector.shape_cast %15 : vector<1x1x7x7xf32> to vector<7x7xf32>
    %17 = vector.shape_cast %14 : vector<7x7xf32> to vector<1x1x7x7xf32>
    tpu.vector_store %arg4[%c0_17, %c1_18, %c0_19, %c0_20], %17 {strides = array<i32>} : memref<1x6x7x7xf32, #tpu.memory_space<vmem>>, vector<1x1x7x7xf32>,
    %c0_21 = arith.constant 0 : index
    %c2 = arith.constant 2 : index
    %c0_22 = arith.constant 0 : index
    %c0_23 = arith.constant 0 : index
    %18 = vector.load %arg1[%c0_21, %c2, %c0_22, %c0_23] : memref<1x6x256x256xbf16, #tpu.memory_space<vmem>>, vector<1x1x256x256xbf16>
    %19 = vector.shape_cast %18 : vector<1x1x256x256xbf16> to vector<256x256xbf16>
    %20 = arith.extf %19 : vector<256x256xbf16> to vector<256x256xf32>
    %cst_24 = arith.constant dense<0.000000e+00> : vector<7x256xf32>
    %21 = tpu.matmul %0, %20, %cst_24 {dimension_numbers = #tpu.dot_dimension_numbers<[1], [0], [0], [1], [0, 0, 1, 1], [], []>} : vector<7x256xf32>, vector<256x256xf32>, vector<7x256xf32> -> vector<7x256xf32>
    %cst_25 = arith.constant dense<0.000000e+00> : vector<7x7xf32>
    %22 = tpu.matmul %21, %1, %cst_25 {dimension_numbers = #tpu.dot_dimension_numbers<[1], [0], [0], [1], [0, 0, 1, 1], [], []>} : vector<7x256xf32>, vector<256x7xf32>, vector<7x7xf32> -> vector<7x7xf32>
    %c0_26 = arith.constant 0 : index
    %c2_27 = arith.constant 2 : index
    %c0_28 = arith.constant 0 : index
    %c0_29 = arith.constant 0 : index
    %23 = vector.load %arg4[%c0_26, %c2_27, %c0_28, %c0_29] : memref<1x6x7x7xf32, #tpu.memory_space<vmem>>, vector<1x1x7x7xf32>
    %24 = vector.shape_cast %23 : vector<1x1x7x7xf32> to vector<7x7xf32>
    %25 = vector.shape_cast %22 : vector<7x7xf32> to vector<1x1x7x7xf32>
    tpu.vector_store %arg4[%c0_26, %c2_27, %c0_28, %c0_29], %25 {strides = array<i32>} : memref<1x6x7x7xf32, #tpu.memory_space<vmem>>, vector<1x1x7x7xf32>,
    %c0_30 = arith.constant 0 : index
    %c3 = arith.constant 3 : index
    %c0_31 = arith.constant 0 : index
    %c0_32 = arith.constant 0 : index
    %26 = vector.load %arg1[%c0_30, %c3, %c0_31, %c0_32] : memref<1x6x256x256xbf16, #tpu.memory_space<vmem>>, vector<1x1x256x256xbf16>
    %27 = vector.shape_cast %26 : vector<1x1x256x256xbf16> to vector<256x256xbf16>
    %28 = arith.extf %27 : vector<256x256xbf16> to vector<256x256xf32>
    %cst_33 = arith.constant dense<0.000000e+00> : vector<7x256xf32>
    %29 = tpu.matmul %0, %28, %cst_33 {dimension_numbers = #tpu.dot_dimension_numbers<[1], [0], [0], [1], [0, 0, 1, 1], [], []>} : vector<7x256xf32>, vector<256x256xf32>, vector<7x256xf32> -> vector<7x256xf32>
    %cst_34 = arith.constant dense<0.000000e+00> : vector<7x7xf32>
    %30 = tpu.matmul %29, %1, %cst_34 {dimension_numbers = #tpu.dot_dimension_numbers<[1], [0], [0], [1], [0, 0, 1, 1], [], []>} : vector<7x256xf32>, vector<256x7xf32>, vector<7x7xf32> -> vector<7x7xf32>
    %c0_35 = arith.constant 0 : index
    %c3_36 = arith.constant 3 : index
    %c0_37 = arith.constant 0 : index
    %c0_38 = arith.constant 0 : index
    %31 = vector.load %arg4[%c0_35, %c3_36, %c0_37, %c0_38] : memref<1x6x7x7xf32, #tpu.memory_space<vmem>>, vector<1x1x7x7xf32>
    %32 = vector.shape_cast %31 : vector<1x1x7x7xf32> to vector<7x7xf32>
    %33 = vector.shape_cast %30 : vector<7x7xf32> to vector<1x1x7x7xf32>
    tpu.vector_store %arg4[%c0_35, %c3_36, %c0_37, %c0_38], %33 {strides = array<i32>} : memref<1x6x7x7xf32, #tpu.memory_space<vmem>>, vector<1x1x7x7xf32>,
    %c0_39 = arith.constant 0 : index
    %c4 = arith.constant 4 : index
    %c0_40 = arith.constant 0 : index
    %c0_41 = arith.constant 0 : index
    %34 = vector.load %arg1[%c0_39, %c4, %c0_40, %c0_41] : memref<1x6x256x256xbf16, #tpu.memory_space<vmem>>, vector<1x1x256x256xbf16>
    %35 = vector.shape_cast %34 : vector<1x1x256x256xbf16> to vector<256x256xbf16>
    %36 = arith.extf %35 : vector<256x256xbf16> to vector<256x256xf32>
    %cst_42 = arith.constant dense<0.000000e+00> : vector<7x256xf32>
    %37 = tpu.matmul %0, %36, %cst_42 {dimension_numbers = #tpu.dot_dimension_numbers<[1], [0], [0], [1], [0, 0, 1, 1], [], []>} : vector<7x256xf32>, vector<256x256xf32>, vector<7x256xf32> -> vector<7x256xf32>
    %cst_43 = arith.constant dense<0.000000e+00> : vector<7x7xf32>
    %38 = tpu.matmul %37, %1, %cst_43 {dimension_numbers = #tpu.dot_dimension_numbers<[1], [0], [0], [1], [0, 0, 1, 1], [], []>} : vector<7x256xf32>, vector<256x7xf32>, vector<7x7xf32> -> vector<7x7xf32>
    %c0_44 = arith.constant 0 : index
    %c4_45 = arith.constant 4 : index
    %c0_46 = arith.constant 0 : index
    %c0_47 = arith.constant 0 : index
    %39 = vector.load %arg4[%c0_44, %c4_45, %c0_46, %c0_47] : memref<1x6x7x7xf32, #tpu.memory_space<vmem>>, vector<1x1x7x7xf32>
    %40 = vector.shape_cast %39 : vector<1x1x7x7xf32> to vector<7x7xf32>
    %41 = vector.shape_cast %38 : vector<7x7xf32> to vector<1x1x7x7xf32>
    tpu.vector_store %arg4[%c0_44, %c4_45, %c0_46, %c0_47], %41 {strides = array<i32>} : memref<1x6x7x7xf32, #tpu.memory_space<vmem>>, vector<1x1x7x7xf32>,
    %c0_48 = arith.constant 0 : index
    %c5 = arith.constant 5 : index
    %c0_49 = arith.constant 0 : index
    %c0_50 = arith.constant 0 : index
    %42 = vector.load %arg1[%c0_48, %c5, %c0_49, %c0_50] : memref<1x6x256x256xbf16, #tpu.memory_space<vmem>>, vector<1x1x256x256xbf16>
    %43 = vector.shape_cast %42 : vector<1x1x256x256xbf16> to vector<256x256xbf16>
    %44 = arith.extf %43 : vector<256x256xbf16> to vector<256x256xf32>
    %cst_51 = arith.constant dense<0.000000e+00> : vector<7x256xf32>
    %45 = tpu.matmul %0, %44, %cst_51 {dimension_numbers = #tpu.dot_dimension_numbers<[1], [0], [0], [1], [0, 0, 1, 1], [], []>} : vector<7x256xf32>, vector<256x256xf32>, vector<7x256xf32> -> vector<7x256xf32>
    %cst_52 = arith.constant dense<0.000000e+00> : vector<7x7xf32>
    %46 = tpu.matmul %45, %1, %cst_52 {dimension_numbers = #tpu.dot_dimension_numbers<[1], [0], [0], [1], [0, 0, 1, 1], [], []>} : vector<7x256xf32>, vector<256x7xf32>, vector<7x7xf32> -> vector<7x7xf32>
    %c0_53 = arith.constant 0 : index
    %c5_54 = arith.constant 5 : index
    %c0_55 = arith.constant 0 : index
    %c0_56 = arith.constant 0 : index
    %47 = vector.load %arg4[%c0_53, %c5_54, %c0_55, %c0_56] : memref<1x6x7x7xf32, #tpu.memory_space<vmem>>, vector<1x1x7x7xf32>
    %48 = vector.shape_cast %47 : vector<1x1x7x7xf32> to vector<7x7xf32>
    %49 = vector.shape_cast %46 : vector<7x7xf32> to vector<1x1x7x7xf32>
    tpu.vector_store %arg4[%c0_53, %c5_54, %c0_55, %c0_56], %49 {strides = array<i32>} : memref<1x6x7x7xf32, #tpu.memory_space<vmem>>, vector<1x1x7x7xf32>,
    return
  }
  func.func @transform_0(%arg0: i32) -> (i32, i32, i32, i32) {
    %c0_i32 = arith.constant 0 : i32
    %c0_i32_0 = arith.constant 0 : i32
    %c0_i32_1 = arith.constant 0 : i32
    %c0_i32_2 = arith.constant 0 : i32
    return %arg0, %c0_i32, %c0_i32_0, %c0_i32_1 : i32, i32, i32, i32
  }
  func.func @transform_1(%arg0: i32) -> (i32, i32) {
    %c0_i32 = arith.constant 0 : i32
    %c0_i32_0 = arith.constant 0 : i32
    %c0_i32_1 = arith.constant 0 : i32
    return %c0_i32, %c0_i32_0 : i32, i32
  }
  func.func @transform_2(%arg0: i32) -> (i32, i32) {
    %c0_i32 = arith.constant 0 : i32
    %c0_i32_0 = arith.constant 0 : i32
    %c0_i32_1 = arith.constant 0 : i32
    return %c0_i32, %c0_i32_0 : i32, i32
  }
  func.func @transform_3(%arg0: i32) -> (i32, i32, i32, i32) {
    %c0_i32 = arith.constant 0 : i32
    %c0_i32_0 = arith.constant 0 : i32
    %c0_i32_1 = arith.constant 0 : i32
    %c0_i32_2 = arith.constant 0 : i32
    return %arg0, %c0_i32, %c0_i32_0, %c0_i32_1 : i32, i32, i32, i32
  }
}

module attributes {stable_mosaic.version = 11 : i64} {
  func.func @_embed_loss_kernel(%arg0: i32, %arg1: memref<2x2x147xf32, #tpu.memory_space<vmem>>, %arg2: memref<147x512xf32, #tpu.memory_space<vmem>>, %arg3: memref<1x512xf32, #tpu.memory_space<vmem>>, %arg4: memref<1x1xf32, #tpu.memory_space<vmem>>) attributes {dimension_semantics = [#tpu.dimension_semantics<arbitrary>], iteration_bounds = array<i64: 1>, scalar_prefetch = 0 : i64, scratch_operands = 0 : i64, tpu.core_type = #tpu.core_type<tc>, window_params = [{pipeline_mode = #tpu.pipeline_mode<synchronous>, transform_indices = @transform_0, window_bounds = array<i64: 2, 2, 147>}, {pipeline_mode = #tpu.pipeline_mode<synchronous>, transform_indices = @transform_1, window_bounds = array<i64: 147, 512>}, {pipeline_mode = #tpu.pipeline_mode<synchronous>, transform_indices = @transform_2, window_bounds = array<i64: 1, 512>}, {pipeline_mode = #tpu.pipeline_mode<synchronous>, transform_indices = @transform_3, window_bounds = array<i64: 1, 1>}]} {
    %c0 = arith.constant 0 : index
    %c0_0 = arith.constant 0 : index
    %0 = vector.load %arg2[%c0, %c0_0] : memref<147x512xf32, #tpu.memory_space<vmem>>, vector<147x512xf32>
    %c0_1 = arith.constant 0 : index
    %c0_2 = arith.constant 0 : index
    %1 = vector.load %arg3[%c0_1, %c0_2] : memref<1x512xf32, #tpu.memory_space<vmem>>, vector<1x512xf32>
    %c0_3 = arith.constant 0 : index
    %c0_4 = arith.constant 0 : index
    %c0_5 = arith.constant 0 : index
    %2 = vector.load %arg1[%c0_3, %c0_4, %c0_5] : memref<2x2x147xf32, #tpu.memory_space<vmem>>, vector<1x2x147xf32>
    %3 = vector.shape_cast %2 : vector<1x2x147xf32> to vector<2x147xf32>
    %cst = arith.constant dense<0.000000e+00> : vector<2x512xf32>
    %4 = tpu.matmul %3, %0, %cst {dimension_numbers = #tpu.dot_dimension_numbers<[1], [0], [0], [1], [0, 0, 1, 1], [], []>} : vector<2x147xf32>, vector<147x512xf32>, vector<2x512xf32> -> vector<2x512xf32>
    %5 = vector.broadcast %1 : vector<1x512xf32> to vector<2x512xf32>
    %6 = arith.addf %4, %5 : vector<2x512xf32>
    %c1 = arith.constant 1 : index
    %c0_6 = arith.constant 0 : index
    %c0_7 = arith.constant 0 : index
    %7 = vector.load %arg1[%c1, %c0_6, %c0_7] : memref<2x2x147xf32, #tpu.memory_space<vmem>>, vector<1x2x147xf32>
    %8 = vector.shape_cast %7 : vector<1x2x147xf32> to vector<2x147xf32>
    %cst_8 = arith.constant dense<0.000000e+00> : vector<2x512xf32>
    %9 = tpu.matmul %8, %0, %cst_8 {dimension_numbers = #tpu.dot_dimension_numbers<[1], [0], [0], [1], [0, 0, 1, 1], [], []>} : vector<2x147xf32>, vector<147x512xf32>, vector<2x512xf32> -> vector<2x512xf32>
    %10 = vector.broadcast %1 : vector<1x512xf32> to vector<2x512xf32>
    %11 = arith.addf %9, %10 : vector<2x512xf32>
    %12 = arith.mulf %6, %6 : vector<2x512xf32>
    %cst_9 = arith.constant dense<0.000000e+00> : vector<2xf32>
    %13 = vector.multi_reduction <add>, %12, %cst_9 [1] : vector<2x512xf32> to vector<2xf32>
    %14 = vector.shape_cast %13 : vector<2xf32> to vector<2x1xf32>
    %cst_10 = arith.constant 9.99999996E-13 : f32
    %15 = vector.broadcast %cst_10 : f32 to vector<2x1xf32>
    %16 = arith.addf %14, %15 : vector<2x1xf32>
    %17 = math.rsqrt %16 : vector<2x1xf32>
    %18 = vector.broadcast %17 : vector<2x1xf32> to vector<2x512xf32>
    %19 = arith.mulf %6, %18 : vector<2x512xf32>
    %20 = arith.mulf %11, %11 : vector<2x512xf32>
    %cst_11 = arith.constant dense<0.000000e+00> : vector<2xf32>
    %21 = vector.multi_reduction <add>, %20, %cst_11 [1] : vector<2x512xf32> to vector<2xf32>
    %22 = vector.shape_cast %21 : vector<2xf32> to vector<2x1xf32>
    %cst_12 = arith.constant 9.99999996E-13 : f32
    %23 = vector.broadcast %cst_12 : f32 to vector<2x1xf32>
    %24 = arith.addf %22, %23 : vector<2x1xf32>
    %25 = math.rsqrt %24 : vector<2x1xf32>
    %26 = vector.broadcast %25 : vector<2x1xf32> to vector<2x512xf32>
    %27 = arith.mulf %11, %26 : vector<2x512xf32>
    %28 = vector.extract_strided_slice %27 {offsets = [0, 0], sizes = [1, 512], strides = [1, 1]} : vector<2x512xf32> to vector<1x512xf32>
    %29 = vector.extract_strided_slice %19 {offsets = [0, 0], sizes = [1, 512], strides = [1, 1]} : vector<2x512xf32> to vector<1x512xf32>
    %30 = arith.mulf %28, %29 : vector<1x512xf32>
    %31 = vector.shape_cast %30 : vector<1x512xf32> to vector<1x1x512xf32>
    %cst_13 = arith.constant dense<0.000000e+00> : vector<1xf32>
    %32 = vector.multi_reduction <add>, %31, %cst_13 [1, 2] : vector<1x1x512xf32> to vector<1xf32>
    %33 = vector.shape_cast %32 : vector<1xf32> to vector<1x1x1xf32>
    %34 = vector.extract %33[0, 0, 0] : f32 from vector<1x1x1xf32>
    %35 = vector.broadcast %34 : f32 to vector<1x1xf32>
    %cst_14 = arith.constant 1.000000e+00 : f32
    %36 = vector.broadcast %cst_14 : f32 to vector<1x1xf32>
    %37 = arith.subf %36, %35 : vector<1x1xf32>
    %c0_15 = arith.constant 0 : index
    %c0_16 = arith.constant 0 : index
    %38 = vector.load %arg4[%c0_15, %c0_16] : memref<1x1xf32, #tpu.memory_space<vmem>>, vector<1x1xf32>
    tpu.vector_store %arg4[%c0_15, %c0_16], %37 {strides = array<i32>} : memref<1x1xf32, #tpu.memory_space<vmem>>, vector<1x1xf32>,
    return
  }
  func.func @transform_0(%arg0: i32) -> (i32, i32, i32) {
    %c0_i32 = arith.constant 0 : i32
    %c0_i32_0 = arith.constant 0 : i32
    %c0_i32_1 = arith.constant 0 : i32
    %c0_i32_2 = arith.constant 0 : i32
    return %c0_i32, %c0_i32_0, %c0_i32_1 : i32, i32, i32
  }
  func.func @transform_1(%arg0: i32) -> (i32, i32) {
    %c0_i32 = arith.constant 0 : i32
    %c0_i32_0 = arith.constant 0 : i32
    %c0_i32_1 = arith.constant 0 : i32
    return %c0_i32, %c0_i32_0 : i32, i32
  }
  func.func @transform_2(%arg0: i32) -> (i32, i32) {
    %c0_i32 = arith.constant 0 : i32
    %c0_i32_0 = arith.constant 0 : i32
    %c0_i32_1 = arith.constant 0 : i32
    return %c0_i32, %c0_i32_0 : i32, i32
  }
  func.func @transform_3(%arg0: i32) -> (i32, i32) {
    %c0_i32 = arith.constant 0 : i32
    %c0_i32_0 = arith.constant 0 : i32
    %c0_i32_1 = arith.constant 0 : i32
    return %c0_i32, %c0_i32_0 : i32, i32
  }
}

</mosaic_0001>

<llo_original>
// kernel: _forward.2
$region0: #{_forward.2}
  #allocation0 [shape = 'u32[]', space=smem, size = 0x4, offset = 0x4, fixed_abs, tag = 'smem constant byte address 0x4 - core index']
  #allocation1 [shape = 'u32[144,128]{1,0:T(1,128)}', space=vmem, size = 0x12000, scoped, tag = 'internal scratch']
  %s0 = inlined_call_operand.vmem [shape: bf16[2,6,256,256], index: 0, kind: input, shape index: {}]
  %s1 = inlined_call_operand.vmem [shape: f32[7,256], index: 1, kind: input, shape index: {}]
  %s2 = inlined_call_operand.vmem [shape: f32[256,7], index: 2, kind: input, shape index: {}]
  %s3 = inlined_call_operand.vmem [shape: f32[2,6,7,7], index: 3, kind: output, shape index: {}]
  %s4 = sld [smem:[#allocation0]]
  $region45: #{_forward.2} parent=0
    _
  %s6 = ssub.s32 1, %s4
  %s7 = scalar_select 0, %s6, %s4
  loop: start=0, step=1, limit=4
  $region2: #{_forward.2} parent=0 // loop_pre_header
    _
  $region3: #{_forward.2} parent=0 // loop_header
    %s9 = sphi 0, %s13
    %p10 = scmp.ge.s32.totalorder %s9, 4
    %s19 = sphi 0, %s21
    %s22 = sphi 0, %s19
    %s23 = sphi 0, %s22
    %s39 = sphi 0, %s23
    %s43 = sphi 0, %s43
    %s45 = sphi 0, %s43
    %s46 = sphi 0, %s45
    %s60 = sphi 0, %s46
    %s64 = sphi 0, %s64
    %s66 = sphi 0, %s64
    %s67 = sphi 0, %s66
    %s81 = sphi 0, %s67
    %s87 = sphi 0, %s89
    %s90 = sphi 0, %s87
    %s91 = sphi 0, %s90
    %s107 = sphi 0, %s91
  $region4: #{_forward.2} parent=0 // loop_header_branch
    %12 = sbr.rel (%p10) target = $region8
  $region5: #{_forward.2} parent=0 // loop_body
    %s14 = ssub.s32 %s9, 1
    %s15 = ssub.s32 %s9, 2
    %s16 = sadd.s32 %s9, 1
    %s17 = ssub.s32 %s9, %s16
    %p18 = scmp.eq.s32.totalorder %s17, 0
    %s20 = sadd.s32 %s19, 1
    %s21 = scalar_select %p18, %s19, %s20
    %p24 = pneg %p18
    %p25 = scmp.eq.s32.totalorder %s9, 1
    %p26 = por %p24, %p25
    %p27 = scmp.ne.s32.totalorder %s19, %s22
    %p28 = scmp.eq.s32.totalorder %s9, 0
    %p29 = por %p27, %p28
    %p30 = scmp.ne.s32.totalorder %s19, %s22
    %p31 = scmp.eq.s32.totalorder %s14, 1
    %p32 = por %p30, %p31
    %p33 = scmp.ne.s32.totalorder %s22, %s23
    %p34 = scmp.eq.s32.totalorder %s14, 0
    %p35 = por %p33, %p34
    %p36 = scmp.ne.s32.totalorder %s22, %s23
    %p37 = scmp.eq.s32.totalorder %s15, 1
    %p38 = por %p36, %p37
    %p40 = scmp.ne.s32.totalorder %s23, %s39
    %p41 = scmp.eq.s32.totalorder %s15, 0
    %p42 = por %p40, %p41
    %s44 = sadd.s32 %s43, 1
    %p47 = scmp.eq.s32.totalorder %s9, 1
    %p48 = scmp.ne.s32.totalorder %s43, %s45
    %p49 = scmp.eq.s32.totalorder %s9, 0
    %p50 = por %p48, %p49
    %p51 = scmp.ne.s32.totalorder %s43, %s45
    %p52 = scmp.eq.s32.totalorder %s14, 1
    %p53 = por %p51, %p52
    %p54 = scmp.ne.s32.totalorder %s45, %s46
    %p55 = scmp.eq.s32.totalorder %s14, 0
    %p56 = por %p54, %p55
    %p57 = scmp.ne.s32.totalorder %s45, %s46
    %p58 = scmp.eq.s32.totalorder %s15, 1
    %p59 = por %p57, %p58
    %p61 = scmp.ne.s32.totalorder %s46, %s60
    %p62 = scmp.eq.s32.totalorder %s15, 0
    %p63 = por %p61, %p62
    %s65 = sadd.s32 %s64, 1
    %p68 = scmp.eq.s32.totalorder %s9, 1
    %p69 = scmp.ne.s32.totalorder %s64, %s66
    %p70 = scmp.eq.s32.totalorder %s9, 0
    %p71 = por %p69, %p70
    %p72 = scmp.ne.s32.totalorder %s64, %s66
    %p73 = scmp.eq.s32.totalorder %s14, 1
    %p74 = por %p72, %p73
    %p75 = scmp.ne.s32.totalorder %s66, %s67
    %p76 = scmp.eq.s32.totalorder %s14, 0
    %p77 = por %p75, %p76
    %p78 = scmp.ne.s32.totalorder %s66, %s67
    %p79 = scmp.eq.s32.totalorder %s15, 1
    %p80 = por %p78, %p79
    %p82 = scmp.ne.s32.totalorder %s67, %s81
    %p83 = scmp.eq.s32.totalorder %s15, 0
    %p84 = por %p82, %p83
    %s85 = ssub.s32 %s9, %s16
    %p86 = scmp.eq.s32.totalorder %s85, 0
    %s88 = sadd.s32 %s87, 1
    %s89 = scalar_select %p86, %s87, %s88
    %p92 = pneg %p86
    %p93 = scmp.eq.s32.totalorder %s9, 1
    %p94 = por %p92, %p93
    %p95 = scmp.ne.s32.totalorder %s87, %s90
    %p96 = scmp.eq.s32.totalorder %s9, 0
    %p97 = por %p95, %p96
    %p98 = scmp.ne.s32.totalorder %s87, %s90
    %p99 = scmp.eq.s32.totalorder %s14, 1
    %p100 = por %p98, %p99
    %p101 = scmp.ne.s32.totalorder %s90, %s91
    %p102 = scmp.eq.s32.totalorder %s14, 0
    %p103 = por %p101, %p102
    %p104 = scmp.ne.s32.totalorder %s90, %s91
    %p105 = scmp.eq.s32.totalorder %s15, 1
    %p106 = por %p104, %p105
    %p108 = scmp.ne.s32.totalorder %s91, %s107
    %p109 = scmp.eq.s32.totalorder %s15, 0
    %p110 = por %p108, %p109
    %p111 = scmp.le.s32.totalorder 1, %s9
    %p112 = scmp.lt.s32.totalorder %s9, 3
    %p113 = pnand %p111, %p112
    %p114 = pneg %p113
    // Predicated region
    $region9: #{_forward.2} parent=5 // pred_check
      _
    $region10: #{_forward.2} parent=5 // pred_check_branch
      %116 = sbr.rel (%p113) target = $region12
    $region11: #{_forward.2} parent=5 // pred_region
      %s117 = ssub.s32 %s9, 1
      // Predicated region
      $region13: #{_forward.2} parent=11 // pred_check
        %p118 = pneg %p56
      $region14: #{_forward.2} parent=11 // pred_check_branch
        %120 = sbr.rel (%p118) target = $region16
      $region15: #{_forward.2} parent=11 // pred_region
        _
      $region16: #{_forward.2} parent=11 // pred_fallthru
        _
      // Predicated region
      $region17: #{_forward.2} parent=11 // pred_check
        %p121 = pneg %p77
      $region18: #{_forward.2} parent=11 // pred_check_branch
        %123 = sbr.rel (%p121) target = $region20
      $region19: #{_forward.2} parent=11 // pred_region
        _
      $region20: #{_forward.2} parent=11 // pred_fallthru
        _
    $region12: #{_forward.2} parent=5 // pred_fallthru
      _
    %p124 = scmp.lt.s32.totalorder %s9, 2
    // Predicated region
    $region21: #{_forward.2} parent=5 // pred_check
      %p125 = pneg %p124
    $region22: #{_forward.2} parent=5 // pred_check_branch
      %127 = sbr.rel (%p125) target = $region24
    $region23: #{_forward.2} parent=5 // pred_region
      // Predicated region
      $region25: #{_forward.2} parent=23 // pred_check
        %p128 = pneg %p29
      $region26: #{_forward.2} parent=23 // pred_check_branch
        %130 = sbr.rel (%p128) target = $region28
      $region27: #{_forward.2} parent=23 // pred_region
        %p131 = scmp.lt.s32.totalorder %s9, 1
        %s132 = scalar_select %p131, %s9, 1
        %s133 = smul.addr %s132, 384
        %s134 = smul.addr %s133, 4
        %s135 = scalar_lea.vmem %s0, %s134
      $region28: #{_forward.2} parent=23 // pred_fallthru
        _
    $region24: #{_forward.2} parent=5 // pred_fallthru
      _
    %p136 = scmp.le.s32.totalorder 1, %s9
    %p137 = scmp.lt.s32.totalorder %s9, 3
    %p138 = pnand %p136, %p137
    %p139 = pneg %p138
    // Predicated region
    $region29: #{_forward.2} parent=5 // pred_check
      _
    $region30: #{_forward.2} parent=5 // pred_check_branch
      %141 = sbr.rel (%p138) target = $region32
    $region31: #{_forward.2} parent=5 // pred_region
      %s142 = ssub.s32 %s9, 1
      %p143 = scmp.lt.s32.totalorder %s14, 1
      %s144 = scalar_select %p143, %s14, 1
      %s145 = smul.addr %s144, 384
      %s146 = smul.addr %s145, 4
      %s147 = scalar_lea.vmem %s0, %s146
      %p148 = pneg %p35
      %p149 = pneg %p32
      %p150 = pneg %p56
      %p151 = pneg %p53
      %p152 = pneg %p77
      %p153 = pneg %p74
      %p154 = pneg %p103
      %p155 = pneg %p100
      %p156 = scmp.lt.s32.totalorder %s14, 1
      %s157 = scalar_select %p156, %s14, 1
      %s158 = smul.addr %s157, 6
      %s159 = smul.addr %s158, 8
      %s160 = scalar_lea.vmem %s3, %s159
      %p161 = scmp.lt.s32.totalorder %s14, 1
      %s162 = scalar_select %p161, %s14, 1
      %s163 = smul.addr %s162, 384
      %s164 = smul.addr %s163, 4
      %s165 = scalar_lea.vmem %s0, %s164
      %p166 = scmp.lt.s32.totalorder %s14, 1
      %s167 = scalar_select %p166, %s14, 1
      %s168 = smul.addr %s167, 6
      %s169 = smul.addr %s168, 8
      %s170 = scalar_lea.vmem %s3, %s169
      %v171 = vld [vmem:[%s1] sm:$0x7f]
      %v172 = vld [vmem:[%s1 + $0x8] sm:$0x7f]
      %v173 = vld [vmem:[%s2] sm:$0xff]
      %v174 = vld [vmem:[%s2 + $0x8] sm:$0xff]
      %v175 = vld [vmem:[%s2 + $0x10] sm:$0xff]
      %v176 = vld [vmem:[%s2 + $0x18] sm:$0xff]
      %v177 = vld [vmem:[%s2 + $0x20] sm:$0xff]
      %v178 = vld [vmem:[%s2 + $0x28] sm:$0xff]
      %v179 = vld [vmem:[%s2 + $0x30] sm:$0xff]
      %v180 = vld [vmem:[%s2 + $0x38] sm:$0xff]
      %v181 = vld [vmem:[%s2 + $0x40] sm:$0xff]
      %v182 = vld [vmem:[%s2 + $0x48] sm:$0xff]
      %v183 = vld [vmem:[%s2 + $0x50] sm:$0xff]
      %v184 = vld [vmem:[%s2 + $0x58] sm:$0xff]
      %v185 = vld [vmem:[%s2 + $0x60] sm:$0xff]
      %v186 = vld [vmem:[%s2 + $0x68] sm:$0xff]
      %v187 = vld [vmem:[%s2 + $0x70] sm:$0xff]
      %v188 = vld [vmem:[%s2 + $0x78] sm:$0xff]
      %v189 = vld [vmem:[%s2 + $0x80] sm:$0xff]
      %v190 = vld [vmem:[%s2 + $0x88] sm:$0xff]
      %v191 = vld [vmem:[%s2 + $0x90] sm:$0xff]
      %v192 = vld [vmem:[%s2 + $0x98] sm:$0xff]
      %v193 = vld [vmem:[%s2 + $0xa0] sm:$0xff]
      %v194 = vld [vmem:[%s2 + $0xa8] sm:$0xff]
      %v195 = vld [vmem:[%s2 + $0xb0] sm:$0xff]
      %v196 = vld [vmem:[%s2 + $0xb8] sm:$0xff]
      %v197 = vld [vmem:[%s2 + $0xc0] sm:$0xff]
      %v198 = vld [vmem:[%s2 + $0xc8] sm:$0xff]
      %v199 = vld [vmem:[%s2 + $0xd0] sm:$0xff]
      %v200 = vld [vmem:[%s2 + $0xd8] sm:$0xff]
      %v201 = vld [vmem:[%s2 + $0xe0] sm:$0xff]
      %v202 = vld [vmem:[%s2 + $0xe8] sm:$0xff]
      %v203 = vld [vmem:[%s2 + $0xf0] sm:$0xff]
      %v204 = vld [vmem:[%s2 + $0xf8] sm:$0xff]
      %v205 = vld [vmem:[%s165] sm:$0xff]
      %v206 = vld [vmem:[%s165 + $0x8] sm:$0xff]
      %v207 = vld [vmem:[%s165 + $0x10] sm:$0xff]
      %v208 = vld [vmem:[%s165 + $0x18] sm:$0xff]
      %v209 = vld [vmem:[%s165 + $0x20] sm:$0xff]
      %v210 = vld [vmem:[%s165 + $0x28] sm:$0xff]
      %v211 = vld [vmem:[%s165 + $0x30] sm:$0xff]
      %v212 = vld [vmem:[%s165 + $0x38] sm:$0xff]
      %v213 = vld [vmem:[%s165 + $0x40] sm:$0xff]
      %v214 = vld [vmem:[%s165 + $0x48] sm:$0xff]
      %v215 = vld [vmem:[%s165 + $0x50] sm:$0xff]
      %v216 = vld [vmem:[%s165 + $0x58] sm:$0xff]
      %v217 = vld [vmem:[%s165 + $0x60] sm:$0xff]
      %v218 = vld [vmem:[%s165 + $0x68] sm:$0xff]
      %v219 = vld [vmem:[%s165 + $0x70] sm:$0xff]
      %v220 = vld [vmem:[%s165 + $0x78] sm:$0xff]
      %v221 = vld [vmem:[%s165 + $0x80] sm:$0xff]
      %v222 = vld [vmem:[%s165 + $0x88] sm:$0xff]
      %v223 = vld [vmem:[%s165 + $0x90] sm:$0xff]
      %v224 = vld [vmem:[%s165 + $0x98] sm:$0xff]
      %v225 = vld [vmem:[%s165 + $0xa0] sm:$0xff]
      %v226 = vld [vmem:[%s165 + $0xa8] sm:$0xff]
      %v227 = vld [vmem:[%s165 + $0xb0] sm:$0xff]
      %v228 = vld [vmem:[%s165 + $0xb8] sm:$0xff]
      %v229 = vld [vmem:[%s165 + $0xc0] sm:$0xff]
      %v230 = vld [vmem:[%s165 + $0xc8] sm:$0xff]
      %v231 = vld [vmem:[%s165 + $0xd0] sm:$0xff]
      %v232 = vld [vmem:[%s165 + $0xd8] sm:$0xff]
      %v233 = vld [vmem:[%s165 + $0xe0] sm:$0xff]
      %v234 = vld [vmem:[%s165 + $0xe8] sm:$0xff]
      %v235 = vld [vmem:[%s165 + $0xf0] sm:$0xff]
      %v236 = vld [vmem:[%s165 + $0xf8] sm:$0xff]
      %v237 = vunpack.c.l.bf16 %v205
      %v238 = vunpack.c.h.bf16 %v205
      %v239 = vunpack.c.l.bf16 %v206
      %v240 = vunpack.c.h.bf16 %v206
      %v241 = vunpack.c.l.bf16 %v207
      %v242 = vunpack.c.h.bf16 %v207
      %v243 = vunpack.c.l.bf16 %v208
      %v244 = vunpack.c.h.bf16 %v208
      %v245 = vunpack.c.l.bf16 %v209
      %v246 = vunpack.c.h.bf16 %v209
      %v247 = vunpack.c.l.bf16 %v210
      %v248 = vunpack.c.h.bf16 %v210
      %v249 = vunpack.c.l.bf16 %v211
      %v250 = vunpack.c.h.bf16 %v211
      %v251 = vunpack.c.l.bf16 %v212
      %v252 = vunpack.c.h.bf16 %v212
      %v253 = vunpack.c.l.bf16 %v213
      %v254 = vunpack.c.h.bf16 %v213
      %v255 = vunpack.c.l.bf16 %v214
      %v256 = vunpack.c.h.bf16 %v214
      %v257 = vunpack.c.l.bf16 %v215
      %v258 = vunpack.c.h.bf16 %v215
      %v259 = vunpack.c.l.bf16 %v216
      %v260 = vunpack.c.h.bf16 %v216
      %v261 = vunpack.c.l.bf16 %v217
      %v262 = vunpack.c.h.bf16 %v217
      %v263 = vunpack.c.l.bf16 %v218
      %v264 = vunpack.c.h.bf16 %v218
      %v265 = vunpack.c.l.bf16 %v219
      %v266 = vunpack.c.h.bf16 %v219
      %v267 = vunpack.c.l.bf16 %v220
      %v268 = vunpack.c.h.bf16 %v220
      %v269 = vunpack.c.l.bf16 %v221
      %v270 = vunpack.c.h.bf16 %v221
      %v271 = vunpack.c.l.bf16 %v222
      %v272 = vunpack.c.h.bf16 %v222
      %v273 = vunpack.c.l.bf16 %v223
      %v274 = vunpack.c.h.bf16 %v223
      %v275 = vunpack.c.l.bf16 %v224
      %v276 = vunpack.c.h.bf16 %v224
      %v277 = vunpack.c.l.bf16 %v225
      %v278 = vunpack.c.h.bf16 %v225
      %v279 = vunpack.c.l.bf16 %v226
      %v280 = vunpack.c.h.bf16 %v226
      %v281 = vunpack.c.l.bf16 %v227
      %v282 = vunpack.c.h.bf16 %v227
      %v283 = vunpack.c.l.bf16 %v228
      %v284 = vunpack.c.h.bf16 %v228
      %v285 = vunpack.c.l.bf16 %v229
      %v286 = vunpack.c.h.bf16 %v229
      %v287 = vunpack.c.l.bf16 %v230
      %v288 = vunpack.c.h.bf16 %v230
      %v289 = vunpack.c.l.bf16 %v231
      %v290 = vunpack.c.h.bf16 %v231
      %v291 = vunpack.c.l.bf16 %v232
      %v292 = vunpack.c.h.bf16 %v232
      %v293 = vunpack.c.l.bf16 %v233
      %v294 = vunpack.c.h.bf16 %v233
      %v295 = vunpack.c.l.bf16 %v234
      %v296 = vunpack.c.h.bf16 %v234
      %v297 = vunpack.c.l.bf16 %v235
      %v298 = vunpack.c.h.bf16 %v235
      %v299 = vunpack.c.l.bf16 %v236
      %v300 = vunpack.c.h.bf16 %v236
      %301 = vmatprep.subr.mxu0 %v238
      %302 = vmatpush1.msra.mxu0 %v237
      %303 = vmatprep.subr.mxu0 %v240
      %304 = vmatpush1.msra.mxu0 %v239
      %305 = vmatprep.subr.mxu0 %v242
      %306 = vmatpush1.msra.mxu0 %v241
      %307 = vmatprep.subr.mxu0 %v244
      %308 = vmatpush1.msra.mxu0 %v243
      %309 = vmatprep.subr.mxu0 %v246
      %310 = vmatpush1.msra.mxu0 %v245
      %311 = vmatprep.subr.mxu0 %v248
      %312 = vmatpush1.msra.mxu0 %v247
      %313 = vmatprep.subr.mxu0 %v250
      %314 = vmatpush1.msra.mxu0 %v249
      %315 = vmatprep.subr.mxu0 %v252
      %316 = vmatpush1.msra.mxu0 %v251
      %317 = vmatprep.subr.mxu0 %v254
      %318 = vmatpush1.msra.mxu0 %v253
      %319 = vmatprep.subr.mxu0 %v256
      %320 = vmatpush1.msra.mxu0 %v255
      %321 = vmatprep.subr.mxu0 %v258
      %322 = vmatpush1.msra.mxu0 %v257
      %323 = vmatprep.subr.mxu0 %v260
      %324 = vmatpush1.msra.mxu0 %v259
      %325 = vmatprep.subr.mxu0 %v262
      %326 = vmatpush1.msra.mxu0 %v261
      %327 = vmatprep.subr.mxu0 %v264
      %328 = vmatpush1.msra.mxu0 %v263
      %329 = vmatprep.subr.mxu0 %v266
      %330 = vmatpush1.msra.mxu0 %v265
      %331 = vmatprep.subr.mxu0 %v268
      %332 = vmatpush1.msra.mxu0 %v267
      %333 = vmatprep.subr.mxu0 %v270
      %334 = vmatpush1.msra.mxu0 %v269
      %335 = vmatprep.subr.mxu0 %v272
      %336 = vmatpush1.msra.mxu0 %v271
      %337 = vmatprep.subr.mxu0 %v274
      %338 = vmatpush1.msra.mxu0 %v273
      %339 = vmatprep.subr.mxu0 %v276
      %340 = vmatpush1.msra.mxu0 %v275
      %341 = vmatprep.subr.mxu0 %v278
      %342 = vmatpush1.msra.mxu0 %v277
      %343 = vmatprep.subr.mxu0 %v280
      %344 = vmatpush1.msra.mxu0 %v279
      %345 = vmatprep.subr.mxu0 %v282
      %346 = vmatpush1.msra.mxu0 %v281
      %347 = vmatprep.subr.mxu0 %v284
      %348 = vmatpush1.msra.mxu0 %v283
      %349 = vmatprep.subr.mxu0 %v286
      %350 = vmatpush1.msra.mxu0 %v285
      %351 = vmatprep.subr.mxu0 %v288
      %352 = vmatpush1.msra.mxu0 %v287
      %353 = vmatprep.subr.mxu0 %v290
      %354 = vmatpush1.msra.mxu0 %v289
      %355 = vmatprep.subr.mxu0 %v292
      %356 = vmatpush1.msra.mxu0 %v291
      %357 = vmatprep.subr.mxu0 %v294
      %358 = vmatpush1.msra.mxu0 %v293
      %359 = vmatprep.subr.mxu0 %v296
      %360 = vmatpush1.msra.mxu0 %v295
      %361 = vmatprep.subr.mxu0 %v298
      %362 = vmatpush1.msra.mxu0 %v297
      %363 = vmatprep.subr.mxu0 %v300
      %364 = vmatpush1.msra.mxu0 %v299
      %365 = vmatprep.mubr.f32.mxu0 %v172
      %366 = vmatmul.mubr.f32.gmra.mrb[0].mxu0 %v171
      %v367 = vpop.f32.mrb[0].mxu0
      %v368 = vadd.f32 0.0, %v367
      %v369 = vpop.f32.mrb[0].mxu0
      %v370 = vadd.f32 0.0, %v369
      %371 = vdwg.mxu0
      %372 = vmatprep.subr.mxu0 0.0
      %373 = vmatpush1.msra.mxu0 %v173
      %374 = vmatprep.subr.mxu0 0.0
      %375 = vmatpush1.msra.mxu0 %v174
      %376 = vmatprep.subr.mxu0 0.0
      %377 = vmatpush1.msra.mxu0 %v175
      %378 = vmatprep.subr.mxu0 0.0
      %379 = vmatpush1.msra.mxu0 %v176
      %380 = vmatprep.subr.mxu0 0.0
      %381 = vmatpush1.msra.mxu0 %v177
      %382 = vmatprep.subr.mxu0 0.0
      %383 = vmatpush1.msra.mxu0 %v178
      %384 = vmatprep.subr.mxu0 0.0
      %385 = vmatpush1.msra.mxu0 %v179
      %386 = vmatprep.subr.mxu0 0.0
      %387 = vmatpush1.msra.mxu0 %v180
      %388 = vmatprep.subr.mxu0 0.0
      %389 = vmatpush1.msra.mxu0 %v181
      %390 = vmatprep.subr.mxu0 0.0
      %391 = vmatpush1.msra.mxu0 %v182
      %392 = vmatprep.subr.mxu0 0.0
      %393 = vmatpush1.msra.mxu0 %v183
      %394 = vmatprep.subr.mxu0 0.0
      %395 = vmatpush1.msra.mxu0 %v184
      %396 = vmatprep.subr.mxu0 0.0
      %397 = vmatpush1.msra.mxu0 %v185
      %398 = vmatprep.subr.mxu0 0.0
      %399 = vmatpush1.msra.mxu0 %v186
      %400 = vmatprep.subr.mxu0 0.0
      %401 = vmatpush1.msra.mxu0 %v187
      %402 = vmatprep.subr.mxu0 0.0
      %403 = vmatpush1.msra.mxu0 %v188
      %404 = vmatprep.subr.mxu0 0.0
      %405 = vmatpush1.msra.mxu0 %v189
      %406 = vmatprep.subr.mxu0 0.0
      %407 = vmatpush1.msra.mxu0 %v190
      %408 = vmatprep.subr.mxu0 0.0
      %409 = vmatpush1.msra.mxu0 %v191
      %410 = vmatprep.subr.mxu0 0.0
      %411 = vmatpush1.msra.mxu0 %v192
      %412 = vmatprep.subr.mxu0 0.0
      %413 = vmatpush1.msra.mxu0 %v193
      %414 = vmatprep.subr.mxu0 0.0
      %415 = vmatpush1.msra.mxu0 %v194
      %416 = vmatprep.subr.mxu0 0.0
      %417 = vmatpush1.msra.mxu0 %v195
      %418 = vmatprep.subr.mxu0 0.0
      %419 = vmatpush1.msra.mxu0 %v196
      %420 = vmatprep.subr.mxu0 0.0
      %421 = vmatpush1.msra.mxu0 %v197
      %422 = vmatprep.subr.mxu0 0.0
      %423 = vmatpush1.msra.mxu0 %v198
      %424 = vmatprep.subr.mxu0 0.0
      %425 = vmatpush1.msra.mxu0 %v199
      %426 = vmatprep.subr.mxu0 0.0
      %427 = vmatpush1.msra.mxu0 %v200
      %428 = vmatprep.subr.mxu0 0.0
      %429 = vmatpush1.msra.mxu0 %v201
      %430 = vmatprep.subr.mxu0 0.0
      %431 = vmatpush1.msra.mxu0 %v202
      %432 = vmatprep.subr.mxu0 0.0
      %433 = vmatpush1.msra.mxu0 %v203
      %434 = vmatprep.subr.mxu0 0.0
      %435 = vmatpush1.msra.mxu0 %v204
      %436 = vmatprep.mubr.f32.mxu0 %v370
      %437 = vmatmul.mubr.f32.gmra.mrb[0].mxu0 %v368
      %v438 = vpop.f32.mrb[0].mxu0
      %v439 = vadd.f32 0.0, %v438
      %v440 = vpop.f32.mrb[0].mxu0
      %441 = vdwg.mxu0
      %vm442 = vcmask 55296
      %443 = vst.msk [vmem:[%s170] sm:$0x7f] %vm442, %v439
      %s444 = scalar_lea.vmem %s165, 256
      %v445 = vld [vmem:[%s444] sm:$0xff]
      %v446 = vld [vmem:[%s444 + $0x8] sm:$0xff]
      %v447 = vld [vmem:[%s444 + $0x10] sm:$0xff]
      %v448 = vld [vmem:[%s444 + $0x18] sm:$0xff]
      %v449 = vld [vmem:[%s444 + $0x20] sm:$0xff]
      %v450 = vld [vmem:[%s444 + $0x28] sm:$0xff]
      %v451 = vld [vmem:[%s444 + $0x30] sm:$0xff]
      %v452 = vld [vmem:[%s444 + $0x38] sm:$0xff]
      %v453 = vld [vmem:[%s444 + $0x40] sm:$0xff]
      %v454 = vld [vmem:[%s444 + $0x48] sm:$0xff]
      %v455 = vld [vmem:[%s444 + $0x50] sm:$0xff]
      %v456 = vld [vmem:[%s444 + $0x58] sm:$0xff]
      %v457 = vld [vmem:[%s444 + $0x60] sm:$0xff]
      %v458 = vld [vmem:[%s444 + $0x68] sm:$0xff]
      %v459 = vld [vmem:[%s444 + $0x70] sm:$0xff]
      %v460 = vld [vmem:[%s444 + $0x78] sm:$0xff]
      %v461 = vld [vmem:[%s444 + $0x80] sm:$0xff]
      %v462 = vld [vmem:[%s444 + $0x88] sm:$0xff]
      %v463 = vld [vmem:[%s444 + $0x90] sm:$0xff]
      %v464 = vld [vmem:[%s444 + $0x98] sm:$0xff]
      %v465 = vld [vmem:[%s444 + $0xa0] sm:$0xff]
      %v466 = vld [vmem:[%s444 + $0xa8] sm:$0xff]
      %v467 = vld [vmem:[%s444 + $0xb0] sm:$0xff]
      %v468 = vld [vmem:[%s444 + $0xb8] sm:$0xff]
      %v469 = vld [vmem:[%s444 + $0xc0] sm:$0xff]
      %v470 = vld [vmem:[%s444 + $0xc8] sm:$0xff]
      %v471 = vld [vmem:[%s444 + $0xd0] sm:$0xff]
      %v472 = vld [vmem:[%s444 + $0xd8] sm:$0xff]
      %v473 = vld [vmem:[%s444 + $0xe0] sm:$0xff]
      %v474 = vld [vmem:[%s444 + $0xe8] sm:$0xff]
      %v475 = vld [vmem:[%s444 + $0xf0] sm:$0xff]
      %v476 = vld [vmem:[%s444 + $0xf8] sm:$0xff]
      %v477 = vunpack.c.l.bf16 %v445
      %v478 = vunpack.c.h.bf16 %v445
      %v479 = vunpack.c.l.bf16 %v446
      %v480 = vunpack.c.h.bf16 %v446
      %v481 = vunpack.c.l.bf16 %v447
      %v482 = vunpack.c.h.bf16 %v447
      %v483 = vunpack.c.l.bf16 %v448
      %v484 = vunpack.c.h.bf16 %v448
      %v485 = vunpack.c.l.bf16 %v449
      %v486 = vunpack.c.h.bf16 %v449
      %v487 = vunpack.c.l.bf16 %v450
      %v488 = vunpack.c.h.bf16 %v450
      %v489 = vunpack.c.l.bf16 %v451
      %v490 = vunpack.c.h.bf16 %v451
      %v491 = vunpack.c.l.bf16 %v452
      %v492 = vunpack.c.h.bf16 %v452
      %v493 = vunpack.c.l.bf16 %v453
      %v494 = vunpack.c.h.bf16 %v453
      %v495 = vunpack.c.l.bf16 %v454
      %v496 = vunpack.c.h.bf16 %v454
      %v497 = vunpack.c.l.bf16 %v455
      %v498 = vunpack.c.h.bf16 %v455
      %v499 = vunpack.c.l.bf16 %v456
      %v500 = vunpack.c.h.bf16 %v456
      %v501 = vunpack.c.l.bf16 %v457
      %v502 = vunpack.c.h.bf16 %v457
      %v503 = vunpack.c.l.bf16 %v458
      %v504 = vunpack.c.h.bf16 %v458
      %v505 = vunpack.c.l.bf16 %v459
      %v506 = vunpack.c.h.bf16 %v459
      %v507 = vunpack.c.l.bf16 %v460
      %v508 = vunpack.c.h.bf16 %v460
      %v509 = vunpack.c.l.bf16 %v461
      %v510 = vunpack.c.h.bf16 %v461
      %v511 = vunpack.c.l.bf16 %v462
      %v512 = vunpack.c.h.bf16 %v462
      %v513 = vunpack.c.l.bf16 %v463
      %v514 = vunpack.c.h.bf16 %v463
      %v515 = vunpack.c.l.bf16 %v464
      %v516 = vunpack.c.h.bf16 %v464
      %v517 = vunpack.c.l.bf16 %v465
      %v518 = vunpack.c.h.bf16 %v465
      %v519 = vunpack.c.l.bf16 %v466
      %v520 = vunpack.c.h.bf16 %v466
      %v521 = vunpack.c.l.bf16 %v467
      %v522 = vunpack.c.h.bf16 %v467
      %v523 = vunpack.c.l.bf16 %v468
      %v524 = vunpack.c.h.bf16 %v468
      %v525 = vunpack.c.l.bf16 %v469
      %v526 = vunpack.c.h.bf16 %v469
      %v527 = vunpack.c.l.bf16 %v470
      %v528 = vunpack.c.h.bf16 %v470
      %v529 = vunpack.c.l.bf16 %v471
      %v530 = vunpack.c.h.bf16 %v471
      %v531 = vunpack.c.l.bf16 %v472
      %v532 = vunpack.c.h.bf16 %v472
      %v533 = vunpack.c.l.bf16 %v473
      %v534 = vunpack.c.h.bf16 %v473
      %v535 = vunpack.c.l.bf16 %v474
      %v536 = vunpack.c.h.bf16 %v474
      %v537 = vunpack.c.l.bf16 %v475
      %v538 = vunpack.c.h.bf16 %v475
      %v539 = vunpack.c.l.bf16 %v476
      %v540 = vunpack.c.h.bf16 %v476
      %541 = vmatprep.subr.mxu0 %v478
      %542 = vmatpush1.msra.mxu0 %v477
      %543 = vmatprep.subr.mxu0 %v480
      %544 = vmatpush1.msra.mxu0 %v479
      %545 = vmatprep.subr.mxu0 %v482
      %546 = vmatpush1.msra.mxu0 %v481
      %547 = vmatprep.subr.mxu0 %v484
      %548 = vmatpush1.msra.mxu0 %v483
      %549 = vmatprep.subr.mxu0 %v486
      %550 = vmatpush1.msra.mxu0 %v485
      %551 = vmatprep.subr.mxu0 %v488
      %552 = vmatpush1.msra.mxu0 %v487
      %553 = vmatprep.subr.mxu0 %v490
      %554 = vmatpush1.msra.mxu0 %v489
      %555 = vmatprep.subr.mxu0 %v492
      %556 = vmatpush1.msra.mxu0 %v491
      %557 = vmatprep.subr.mxu0 %v494
      %558 = vmatpush1.msra.mxu0 %v493
      %559 = vmatprep.subr.mxu0 %v496
      %560 = vmatpush1.msra.mxu0 %v495
      %561 = vmatprep.subr.mxu0 %v498
      %562 = vmatpush1.msra.mxu0 %v497
      %563 = vmatprep.subr.mxu0 %v500
      %564 = vmatpush1.msra.mxu0 %v499
      %565 = vmatprep.subr.mxu0 %v502
      %566 = vmatpush1.msra.mxu0 %v501
      %567 = vmatprep.subr.mxu0 %v504
      %568 = vmatpush1.msra.mxu0 %v503
      %569 = vmatprep.subr.mxu0 %v506
      %570 = vmatpush1.msra.mxu0 %v505
      %571 = vmatprep.subr.mxu0 %v508
      %572 = vmatpush1.msra.mxu0 %v507
      %573 = vmatprep.subr.mxu0 %v510
      %574 = vmatpush1.msra.mxu0 %v509
      %575 = vmatprep.subr.mxu0 %v512
      %576 = vmatpush1.msra.mxu0 %v511
      %577 = vmatprep.subr.mxu0 %v514
      %578 = vmatpush1.msra.mxu0 %v513
      %579 = vmatprep.subr.mxu0 %v516
      %580 = vmatpush1.msra.mxu0 %v515
      %581 = vmatprep.subr.mxu0 %v518
      %582 = vmatpush1.msra.mxu0 %v517
      %583 = vmatprep.subr.mxu0 %v520
      %584 = vmatpush1.msra.mxu0 %v519
      %585 = vmatprep.subr.mxu0 %v522
      %586 = vmatpush1.msra.mxu0 %v521
      %587 = vmatprep.subr.mxu0 %v524
      %588 = vmatpush1.msra.mxu0 %v523
      %589 = vmatprep.subr.mxu0 %v526
      %590 = vmatpush1.msra.mxu0 %v525
      %591 = vmatprep.subr.mxu0 %v528
      %592 = vmatpush1.msra.mxu0 %v527
      %593 = vmatprep.subr.mxu0 %v530
      %594 = vmatpush1.msra.mxu0 %v529
      %595 = vmatprep.subr.mxu0 %v532
      %596 = vmatpush1.msra.mxu0 %v531
      %597 = vmatprep.subr.mxu0 %v534
      %598 = vmatpush1.msra.mxu0 %v533
      %599 = vmatprep.subr.mxu0 %v536
      %600 = vmatpush1.msra.mxu0 %v535
      %601 = vmatprep.subr.mxu0 %v538
      %602 = vmatpush1.msra.mxu0 %v537
      %603 = vmatprep.subr.mxu0 %v540
      %604 = vmatpush1.msra.mxu0 %v539
      %605 = vmatprep.mubr.f32.mxu0 %v172
      %606 = vmatmul.mubr.f32.gmra.mrb[0].mxu0 %v171
      %v607 = vpop.f32.mrb[0].mxu0
      %v608 = vadd.f32 0.0, %v607
      %v609 = vpop.f32.mrb[0].mxu0
      %v610 = vadd.f32 0.0, %v609
      %611 = vdwg.mxu0
      %612 = vmatprep.subr.mxu0 0.0
      %613 = vmatpush1.msra.mxu0 %v173
      %614 = vmatprep.subr.mxu0 0.0
      %615 = vmatpush1.msra.mxu0 %v174
      %616 = vmatprep.subr.mxu0 0.0
      %617 = vmatpush1.msra.mxu0 %v175
      %618 = vmatprep.subr.mxu0 0.0
      %619 = vmatpush1.msra.mxu0 %v176
      %620 = vmatprep.subr.mxu0 0.0
      %621 = vmatpush1.msra.mxu0 %v177
      %622 = vmatprep.subr.mxu0 0.0
      %623 = vmatpush1.msra.mxu0 %v178
      %624 = vmatprep.subr.mxu0 0.0
      %625 = vmatpush1.msra.mxu0 %v179
      %626 = vmatprep.subr.mxu0 0.0
      %627 = vmatpush1.msra.mxu0 %v180
      %628 = vmatprep.subr.mxu0 0.0
      %629 = vmatpush1.msra.mxu0 %v181
      %630 = vmatprep.subr.mxu0 0.0
      %631 = vmatpush1.msra.mxu0 %v182
      %632 = vmatprep.subr.mxu0 0.0
      %633 = vmatpush1.msra.mxu0 %v183
      %634 = vmatprep.subr.mxu0 0.0
      %635 = vmatpush1.msra.mxu0 %v184
      %636 = vmatprep.subr.mxu0 0.0
      %637 = vmatpush1.msra.mxu0 %v185
      %638 = vmatprep.subr.mxu0 0.0
      %639 = vmatpush1.msra.mxu0 %v186
      %640 = vmatprep.subr.mxu0 0.0
      %641 = vmatpush1.msra.mxu0 %v187
      %642 = vmatprep.subr.mxu0 0.0
      %643 = vmatpush1.msra.mxu0 %v188
      %644 = vmatprep.subr.mxu0 0.0
      %645 = vmatpush1.msra.mxu0 %v189
      %646 = vmatprep.subr.mxu0 0.0
      %647 = vmatpush1.msra.mxu0 %v190
      %648 = vmatprep.subr.mxu0 0.0
      %649 = vmatpush1.msra.mxu0 %v191
      %650 = vmatprep.subr.mxu0 0.0
      %651 = vmatpush1.msra.mxu0 %v192
      %652 = vmatprep.subr.mxu0 0.0
      %653 = vmatpush1.msra.mxu0 %v193
      %654 = vmatprep.subr.mxu0 0.0
      %655 = vmatpush1.msra.mxu0 %v194
      %656 = vmatprep.subr.mxu0 0.0
      %657 = vmatpush1.msra.mxu0 %v195
      %658 = vmatprep.subr.mxu0 0.0
      %659 = vmatpush1.msra.mxu0 %v196
      %660 = vmatprep.subr.mxu0 0.0
      %661 = vmatpush1.msra.mxu0 %v197
      %662 = vmatprep.subr.mxu0 0.0
      %663 = vmatpush1.msra.mxu0 %v198
      %664 = vmatprep.subr.mxu0 0.0
      %665 = vmatpush1.msra.mxu0 %v199
      %666 = vmatprep.subr.mxu0 0.0
      %667 = vmatpush1.msra.mxu0 %v200
      %668 = vmatprep.subr.mxu0 0.0
      %669 = vmatpush1.msra.mxu0 %v201
      %670 = vmatprep.subr.mxu0 0.0
      %671 = vmatpush1.msra.mxu0 %v202
      %672 = vmatprep.subr.mxu0 0.0
      %673 = vmatpush1.msra.mxu0 %v203
      %674 = vmatprep.subr.mxu0 0.0
      %675 = vmatpush1.msra.mxu0 %v204
      %676 = vmatprep.mubr.f32.mxu0 %v610
      %677 = vmatmul.mubr.f32.gmra.mrb[0].mxu0 %v608
      %v678 = vpop.f32.mrb[0].mxu0
      %v679 = vadd.f32 0.0, %v678
      %v680 = vpop.f32.mrb[0].mxu0
      %681 = vdwg.mxu0
      %s682 = scalar_lea.vmem %s170, 8
      %683 = vst.msk [vmem:[%s682] sm:$0x7f] %vm442, %v679
      %s684 = scalar_lea.vmem %s165, 512
      %v685 = vld [vmem:[%s684] sm:$0xff]
      %v686 = vld [vmem:[%s684 + $0x8] sm:$0xff]
      %v687 = vld [vmem:[%s684 + $0x10] sm:$0xff]
      %v688 = vld [vmem:[%s684 + $0x18] sm:$0xff]
      %v689 = vld [vmem:[%s684 + $0x20] sm:$0xff]
      %v690 = vld [vmem:[%s684 + $0x28] sm:$0xff]
      %v691 = vld [vmem:[%s684 + $0x30] sm:$0xff]
      %v692 = vld [vmem:[%s684 + $0x38] sm:$0xff]
      %v693 = vld [vmem:[%s684 + $0x40] sm:$0xff]
      %v694 = vld [vmem:[%s684 + $0x48] sm:$0xff]
      %v695 = vld [vmem:[%s684 + $0x50] sm:$0xff]
      %v696 = vld [vmem:[%s684 + $0x58] sm:$0xff]
      %v697 = vld [vmem:[%s684 + $0x60] sm:$0xff]
      %v698 = vld [vmem:[%s684 + $0x68] sm:$0xff]
      %v699 = vld [vmem:[%s684 + $0x70] sm:$0xff]
      %v700 = vld [vmem:[%s684 + $0x78] sm:$0xff]
      %v701 = vld [vmem:[%s684 + $0x80] sm:$0xff]
      %v702 = vld [vmem:[%s684 + $0x88] sm:$0xff]
      %v703 = vld [vmem:[%s684 + $0x90] sm:$0xff]
      %v704 = vld [vmem:[%s684 + $0x98] sm:$0xff]
      %v705 = vld [vmem:[%s684 + $0xa0] sm:$0xff]
      %v706 = vld [vmem:[%s684 + $0xa8] sm:$0xff]
      %v707 = vld [vmem:[%s684 + $0xb0] sm:$0xff]
      %v708 = vld [vmem:[%s684 + $0xb8] sm:$0xff]
      %v709 = vld [vmem:[%s684 + $0xc0] sm:$0xff]
      %v710 = vld [vmem:[%s684 + $0xc8] sm:$0xff]
      %v711 = vld [vmem:[%s684 + $0xd0] sm:$0xff]
      %v712 = vld [vmem:[%s684 + $0xd8] sm:$0xff]
      %v713 = vld [vmem:[%s684 + $0xe0] sm:$0xff]
      %v714 = vld [vmem:[%s684 + $0xe8] sm:$0xff]
      %v715 = vld [vmem:[%s684 + $0xf0] sm:$0xff]
      %v716 = vld [vmem:[%s684 + $0xf8] sm:$0xff]
      %v717 = vunpack.c.l.bf16 %v685
      %v718 = vunpack.c.h.bf16 %v685
      %v719 = vunpack.c.l.bf16 %v686
      %v720 = vunpack.c.h.bf16 %v686
      %v721 = vunpack.c.l.bf16 %v687
      %v722 = vunpack.c.h.bf16 %v687
      %v723 = vunpack.c.l.bf16 %v688
      %v724 = vunpack.c.h.bf16 %v688
      %v725 = vunpack.c.l.bf16 %v689
      %v726 = vunpack.c.h.bf16 %v689
      %v727 = vunpack.c.l.bf16 %v690
      %v728 = vunpack.c.h.bf16 %v690
      %v729 = vunpack.c.l.bf16 %v691
      %v730 = vunpack.c.h.bf16 %v691
      %v731 = vunpack.c.l.bf16 %v692
      %v732 = vunpack.c.h.bf16 %v692
      %v733 = vunpack.c.l.bf16 %v693
      %v734 = vunpack.c.h.bf16 %v693
      %v735 = vunpack.c.l.bf16 %v694
      %v736 = vunpack.c.h.bf16 %v694
      %v737 = vunpack.c.l.bf16 %v695
      %v738 = vunpack.c.h.bf16 %v695
      %v739 = vunpack.c.l.bf16 %v696
      %v740 = vunpack.c.h.bf16 %v696
      %v741 = vunpack.c.l.bf16 %v697
      %v742 = vunpack.c.h.bf16 %v697
      %v743 = vunpack.c.l.bf16 %v698
      %v744 = vunpack.c.h.bf16 %v698
      %v745 = vunpack.c.l.bf16 %v699
      %v746 = vunpack.c.h.bf16 %v699
      %v747 = vunpack.c.l.bf16 %v700
      %v748 = vunpack.c.h.bf16 %v700
      %v749 = vunpack.c.l.bf16 %v701
      %v750 = vunpack.c.h.bf16 %v701
      %v751 = vunpack.c.l.bf16 %v702
      %v752 = vunpack.c.h.bf16 %v702
      %v753 = vunpack.c.l.bf16 %v703
      %v754 = vunpack.c.h.bf16 %v703
      %v755 = vunpack.c.l.bf16 %v704
      %v756 = vunpack.c.h.bf16 %v704
      %v757 = vunpack.c.l.bf16 %v705
      %v758 = vunpack.c.h.bf16 %v705
      %v759 = vunpack.c.l.bf16 %v706
      %v760 = vunpack.c.h.bf16 %v706
      %v761 = vunpack.c.l.bf16 %v707
      %v762 = vunpack.c.h.bf16 %v707
      %v763 = vunpack.c.l.bf16 %v708
      %v764 = vunpack.c.h.bf16 %v708
      %v765 = vunpack.c.l.bf16 %v709
      %v766 = vunpack.c.h.bf16 %v709
      %v767 = vunpack.c.l.bf16 %v710
      %v768 = vunpack.c.h.bf16 %v710
      %v769 = vunpack.c.l.bf16 %v711
      %v770 = vunpack.c.h.bf16 %v711
      %v771 = vunpack.c.l.bf16 %v712
      %v772 = vunpack.c.h.bf16 %v712
      %v773 = vunpack.c.l.bf16 %v713
      %v774 = vunpack.c.h.bf16 %v713
      %v775 = vunpack.c.l.bf16 %v714
      %v776 = vunpack.c.h.bf16 %v714
      %v777 = vunpack.c.l.bf16 %v715
      %v778 = vunpack.c.h.bf16 %v715
      %v779 = vunpack.c.l.bf16 %v716
      %v780 = vunpack.c.h.bf16 %v716
      %781 = vmatprep.subr.mxu0 %v718
      %782 = vmatpush1.msra.mxu0 %v717
      %783 = vmatprep.subr.mxu0 %v720
      %784 = vmatpush1.msra.mxu0 %v719
      %785 = vmatprep.subr.mxu0 %v722
      %786 = vmatpush1.msra.mxu0 %v721
      %787 = vmatprep.subr.mxu0 %v724
      %788 = vmatpush1.msra.mxu0 %v723
      %789 = vmatprep.subr.mxu0 %v726
      %790 = vmatpush1.msra.mxu0 %v725
      %791 = vmatprep.subr.mxu0 %v728
      %792 = vmatpush1.msra.mxu0 %v727
      %793 = vmatprep.subr.mxu0 %v730
      %794 = vmatpush1.msra.mxu0 %v729
      %795 = vmatprep.subr.mxu0 %v732
      %796 = vmatpush1.msra.mxu0 %v731
      %797 = vmatprep.subr.mxu0 %v734
      %798 = vmatpush1.msra.mxu0 %v733
      %799 = vmatprep.subr.mxu0 %v736
      %800 = vmatpush1.msra.mxu0 %v735
      %801 = vmatprep.subr.mxu0 %v738
      %802 = vmatpush1.msra.mxu0 %v737
      %803 = vmatprep.subr.mxu0 %v740
      %804 = vmatpush1.msra.mxu0 %v739
      %805 = vmatprep.subr.mxu0 %v742
      %806 = vmatpush1.msra.mxu0 %v741
      %807 = vmatprep.subr.mxu0 %v744
      %808 = vmatpush1.msra.mxu0 %v743
      %809 = vmatprep.subr.mxu0 %v746
      %810 = vmatpush1.msra.mxu0 %v745
      %811 = vmatprep.subr.mxu0 %v748
      %812 = vmatpush1.msra.mxu0 %v747
      %813 = vmatprep.subr.mxu0 %v750
      %814 = vmatpush1.msra.mxu0 %v749
      %815 = vmatprep.subr.mxu0 %v752
      %816 = vmatpush1.msra.mxu0 %v751
      %817 = vmatprep.subr.mxu0 %v754
      %818 = vmatpush1.msra.mxu0 %v753
      %819 = vmatprep.subr.mxu0 %v756
      %820 = vmatpush1.msra.mxu0 %v755
      %821 = vmatprep.subr.mxu0 %v758
      %822 = vmatpush1.msra.mxu0 %v757
      %823 = vmatprep.subr.mxu0 %v760
      %824 = vmatpush1.msra.mxu0 %v759
      %825 = vmatprep.subr.mxu0 %v762
      %826 = vmatpush1.msra.mxu0 %v761
      %827 = vmatprep.subr.mxu0 %v764
      %828 = vmatpush1.msra.mxu0 %v763
      %829 = vmatprep.subr.mxu0 %v766
      %830 = vmatpush1.msra.mxu0 %v765
      %831 = vmatprep.subr.mxu0 %v768
      %832 = vmatpush1.msra.mxu0 %v767
      %833 = vmatprep.subr.mxu0 %v770
      %834 = vmatpush1.msra.mxu0 %v769
      %835 = vmatprep.subr.mxu0 %v772
      %836 = vmatpush1.msra.mxu0 %v771
      %837 = vmatprep.subr.mxu0 %v774
      %838 = vmatpush1.msra.mxu0 %v773
      %839 = vmatprep.subr.mxu0 %v776
      %840 = vmatpush1.msra.mxu0 %v775
      %841 = vmatprep.subr.mxu0 %v778
      %842 = vmatpush1.msra.mxu0 %v777
      %843 = vmatprep.subr.mxu0 %v780
      %844 = vmatpush1.msra.mxu0 %v779
      %845 = vmatprep.mubr.f32.mxu0 %v172
      %846 = vmatmul.mubr.f32.gmra.mrb[0].mxu0 %v171
      %v847 = vpop.f32.mrb[0].mxu0
      %v848 = vadd.f32 0.0, %v847
      %v849 = vpop.f32.mrb[0].mxu0
      %v850 = vadd.f32 0.0, %v849
      %851 = vdwg.mxu0
      %852 = vmatprep.subr.mxu0 0.0
      %853 = vmatpush1.msra.mxu0 %v173
      %854 = vmatprep.subr.mxu0 0.0
      %855 = vmatpush1.msra.mxu0 %v174
      %856 = vmatprep.subr.mxu0 0.0
      %857 = vmatpush1.msra.mxu0 %v175
      %858 = vmatprep.subr.mxu0 0.0
      %859 = vmatpush1.msra.mxu0 %v176
      %860 = vmatprep.subr.mxu0 0.0
      %861 = vmatpush1.msra.mxu0 %v177
      %862 = vmatprep.subr.mxu0 0.0
      %863 = vmatpush1.msra.mxu0 %v178
      %864 = vmatprep.subr.mxu0 0.0
      %865 = vmatpush1.msra.mxu0 %v179
      %866 = vmatprep.subr.mxu0 0.0
      %867 = vmatpush1.msra.mxu0 %v180
      %868 = vmatprep.subr.mxu0 0.0
      %869 = vmatpush1.msra.mxu0 %v181
      %870 = vmatprep.subr.mxu0 0.0
      %871 = vmatpush1.msra.mxu0 %v182
      %872 = vmatprep.subr.mxu0 0.0
      %873 = vmatpush1.msra.mxu0 %v183
      %874 = vmatprep.subr.mxu0 0.0
      %875 = vmatpush1.msra.mxu0 %v184
      %876 = vmatprep.subr.mxu0 0.0
      %877 = vmatpush1.msra.mxu0 %v185
      %878 = vmatprep.subr.mxu0 0.0
      %879 = vmatpush1.msra.mxu0 %v186
      %880 = vmatprep.subr.mxu0 0.0
      %881 = vmatpush1.msra.mxu0 %v187
      %882 = vmatprep.subr.mxu0 0.0
      %883 = vmatpush1.msra.mxu0 %v188
      %884 = vmatprep.subr.mxu0 0.0
      %885 = vmatpush1.msra.mxu0 %v189
      %886 = vmatprep.subr.mxu0 0.0
      %887 = vmatpush1.msra.mxu0 %v190
      %888 = vmatprep.subr.mxu0 0.0
      %889 = vmatpush1.msra.mxu0 %v191
      %890 = vmatprep.subr.mxu0 0.0
      %891 = vmatpush1.msra.mxu0 %v192
      %892 = vmatprep.subr.mxu0 0.0
      %893 = vmatpush1.msra.mxu0 %v193
      %894 = vmatprep.subr.mxu0 0.0
      %895 = vmatpush1.msra.mxu0 %v194
      %896 = vmatprep.subr.mxu0 0.0
      %897 = vmatpush1.msra.mxu0 %v195
      %898 = vmatprep.subr.mxu0 0.0
      %899 = vmatpush1.msra.mxu0 %v196
      %900 = vmatprep.subr.mxu0 0.0
      %901 = vmatpush1.msra.mxu0 %v197
      %902 = vmatprep.subr.mxu0 0.0
      %903 = vmatpush1.msra.mxu0 %v198
      %904 = vmatprep.subr.mxu0 0.0
      %905 = vmatpush1.msra.mxu0 %v199
      %906 = vmatprep.subr.mxu0 0.0
      %907 = vmatpush1.msra.mxu0 %v200
      %908 = vmatprep.subr.mxu0 0.0
      %909 = vmatpush1.msra.mxu0 %v201
      %910 = vmatprep.subr.mxu0 0.0
      %911 = vmatpush1.msra.mxu0 %v202
      %912 = vmatprep.subr.mxu0 0.0
      %913 = vmatpush1.msra.mxu0 %v203
      %914 = vmatprep.subr.mxu0 0.0
      %915 = vmatpush1.msra.mxu0 %v204
      %916 = vmatprep.mubr.f32.mxu0 %v850
      %917 = vmatmul.mubr.f32.gmra.mrb[0].mxu0 %v848
      %v918 = vpop.f32.mrb[0].mxu0
      %v919 = vadd.f32 0.0, %v918
      %v920 = vpop.f32.mrb[0].mxu0
      %921 = vdwg.mxu0
      %s922 = scalar_lea.vmem %s170, 16
      %923 = vst.msk [vmem:[%s922] sm:$0x7f] %vm442, %v919
      %s924 = scalar_lea.vmem %s165, 768
      %v925 = vld [vmem:[%s924] sm:$0xff]
      %v926 = vld [vmem:[%s924 + $0x8] sm:$0xff]
      %v927 = vld [vmem:[%s924 + $0x10] sm:$0xff]
      %v928 = vld [vmem:[%s924 + $0x18] sm:$0xff]
      %v929 = vld [vmem:[%s924 + $0x20] sm:$0xff]
      %v930 = vld [vmem:[%s924 + $0x28] sm:$0xff]
      %v931 = vld [vmem:[%s924 + $0x30] sm:$0xff]
      %v932 = vld [vmem:[%s924 + $0x38] sm:$0xff]
      %v933 = vld [vmem:[%s924 + $0x40] sm:$0xff]
      %v934 = vld [vmem:[%s924 + $0x48] sm:$0xff]
      %v935 = vld [vmem:[%s924 + $0x50] sm:$0xff]
      %v936 = vld [vmem:[%s924 + $0x58] sm:$0xff]
      %v937 = vld [vmem:[%s924 + $0x60] sm:$0xff]
      %v938 = vld [vmem:[%s924 + $0x68] sm:$0xff]
      %v939 = vld [vmem:[%s924 + $0x70] sm:$0xff]
      %v940 = vld [vmem:[%s924 + $0x78] sm:$0xff]
      %v941 = vld [vmem:[%s924 + $0x80] sm:$0xff]
      %v942 = vld [vmem:[%s924 + $0x88] sm:$0xff]
      %v943 = vld [vmem:[%s924 + $0x90] sm:$0xff]
      %v944 = vld [vmem:[%s924 + $0x98] sm:$0xff]
      %v945 = vld [vmem:[%s924 + $0xa0] sm:$0xff]
      %v946 = vld [vmem:[%s924 + $0xa8] sm:$0xff]
      %v947 = vld [vmem:[%s924 + $0xb0] sm:$0xff]
      %v948 = vld [vmem:[%s924 + $0xb8] sm:$0xff]
      %v949 = vld [vmem:[%s924 + $0xc0] sm:$0xff]
      %v950 = vld [vmem:[%s924 + $0xc8] sm:$0xff]
      %v951 = vld [vmem:[%s924 + $0xd0] sm:$0xff]
      %v952 = vld [vmem:[%s924 + $0xd8] sm:$0xff]
      %v953 = vld [vmem:[%s924 + $0xe0] sm:$0xff]
      %v954 = vld [vmem:[%s924 + $0xe8] sm:$0xff]
      %v955 = vld [vmem:[%s924 + $0xf0] sm:$0xff]
      %v956 = vld [vmem:[%s924 + $0xf8] sm:$0xff]
      %v957 = vunpack.c.l.bf16 %v925
      %v958 = vunpack.c.h.bf16 %v925
      %v959 = vunpack.c.l.bf16 %v926
      %v960 = vunpack.c.h.bf16 %v926
      %v961 = vunpack.c.l.bf16 %v927
      %v962 = vunpack.c.h.bf16 %v927
      %v963 = vunpack.c.l.bf16 %v928
      %v964 = vunpack.c.h.bf16 %v928
      %v965 = vunpack.c.l.bf16 %v929
      %v966 = vunpack.c.h.bf16 %v929
      %v967 = vunpack.c.l.bf16 %v930
      %v968 = vunpack.c.h.bf16 %v930
      %v969 = vunpack.c.l.bf16 %v931
      %v970 = vunpack.c.h.bf16 %v931
      %v971 = vunpack.c.l.bf16 %v932
      %v972 = vunpack.c.h.bf16 %v932
      %v973 = vunpack.c.l.bf16 %v933
      %v974 = vunpack.c.h.bf16 %v933
      %v975 = vunpack.c.l.bf16 %v934
      %v976 = vunpack.c.h.bf16 %v934
      %v977 = vunpack.c.l.bf16 %v935
      %v978 = vunpack.c.h.bf16 %v935
      %v979 = vunpack.c.l.bf16 %v936
      %v980 = vunpack.c.h.bf16 %v936
      %v981 = vunpack.c.l.bf16 %v937
      %v982 = vunpack.c.h.bf16 %v937
      %v983 = vunpack.c.l.bf16 %v938
      %v984 = vunpack.c.h.bf16 %v938
      %v985 = vunpack.c.l.bf16 %v939
      %v986 = vunpack.c.h.bf16 %v939
      %v987 = vunpack.c.l.bf16 %v940
      %v988 = vunpack.c.h.bf16 %v940
      %v989 = vunpack.c.l.bf16 %v941
      %v990 = vunpack.c.h.bf16 %v941
      %v991 = vunpack.c.l.bf16 %v942
      %v992 = vunpack.c.h.bf16 %v942
      %v993 = vunpack.c.l.bf16 %v943
      %v994 = vunpack.c.h.bf16 %v943
      %v995 = vunpack.c.l.bf16 %v944
      %v996 = vunpack.c.h.bf16 %v944
      %v997 = vunpack.c.l.bf16 %v945
      %v998 = vunpack.c.h.bf16 %v945
      %v999 = vunpack.c.l.bf16 %v946
      %v1000 = vunpack.c.h.bf16 %v946
      %v1001 = vunpack.c.l.bf16 %v947
      %v1002 = vunpack.c.h.bf16 %v947
      %v1003 = vunpack.c.l.bf16 %v948
      %v1004 = vunpack.c.h.bf16 %v948
      %v1005 = vunpack.c.l.bf16 %v949
      %v1006 = vunpack.c.h.bf16 %v949
      %v1007 = vunpack.c.l.bf16 %v950
      %v1008 = vunpack.c.h.bf16 %v950
      %v1009 = vunpack.c.l.bf16 %v951
      %v1010 = vunpack.c.h.bf16 %v951
      %v1011 = vunpack.c.l.bf16 %v952
      %v1012 = vunpack.c.h.bf16 %v952
      %v1013 = vunpack.c.l.bf16 %v953
      %v1014 = vunpack.c.h.bf16 %v953
      %v1015 = vunpack.c.l.bf16 %v954
      %v1016 = vunpack.c.h.bf16 %v954
      %v1017 = vunpack.c.l.bf16 %v955
      %v1018 = vunpack.c.h.bf16 %v955
      %v1019 = vunpack.c.l.bf16 %v956
      %v1020 = vunpack.c.h.bf16 %v956
      %1021 = vmatprep.subr.mxu0 %v958
      %1022 = vmatpush1.msra.mxu0 %v957
      %1023 = vmatprep.subr.mxu0 %v960
      %1024 = vmatpush1.msra.mxu0 %v959
      %1025 = vmatprep.subr.mxu0 %v962
      %1026 = vmatpush1.msra.mxu0 %v961
      %1027 = vmatprep.subr.mxu0 %v964
      %1028 = vmatpush1.msra.mxu0 %v963
      %1029 = vmatprep.subr.mxu0 %v966
      %1030 = vmatpush1.msra.mxu0 %v965
      %1031 = vmatprep.subr.mxu0 %v968
      %1032 = vmatpush1.msra.mxu0 %v967
      %1033 = vmatprep.subr.mxu0 %v970
      %1034 = vmatpush1.msra.mxu0 %v969
      %1035 = vmatprep.subr.mxu0 %v972
      %1036 = vmatpush1.msra.mxu0 %v971
      %1037 = vmatprep.subr.mxu0 %v974
      %1038 = vmatpush1.msra.mxu0 %v973
      %1039 = vmatprep.subr.mxu0 %v976
      %1040 = vmatpush1.msra.mxu0 %v975
      %1041 = vmatprep.subr.mxu0 %v978
      %1042 = vmatpush1.msra.mxu0 %v977
      %1043 = vmatprep.subr.mxu0 %v980
      %1044 = vmatpush1.msra.mxu0 %v979
      %1045 = vmatprep.subr.mxu0 %v982
      %1046 = vmatpush1.msra.mxu0 %v981
      %1047 = vmatprep.subr.mxu0 %v984
      %1048 = vmatpush1.msra.mxu0 %v983
      %1049 = vmatprep.subr.mxu0 %v986
      %1050 = vmatpush1.msra.mxu0 %v985
      %1051 = vmatprep.subr.mxu0 %v988
      %1052 = vmatpush1.msra.mxu0 %v987
      %1053 = vmatprep.subr.mxu0 %v990
      %1054 = vmatpush1.msra.mxu0 %v989
      %1055 = vmatprep.subr.mxu0 %v992
      %1056 = vmatpush1.msra.mxu0 %v991
      %1057 = vmatprep.subr.mxu0 %v994
      %1058 = vmatpush1.msra.mxu0 %v993
      %1059 = vmatprep.subr.mxu0 %v996
      %1060 = vmatpush1.msra.mxu0 %v995
      %1061 = vmatprep.subr.mxu0 %v998
      %1062 = vmatpush1.msra.mxu0 %v997
      %1063 = vmatprep.subr.mxu0 %v1000
      %1064 = vmatpush1.msra.mxu0 %v999
      %1065 = vmatprep.subr.mxu0 %v1002
      %1066 = vmatpush1.msra.mxu0 %v1001
      %1067 = vmatprep.subr.mxu0 %v1004
      %1068 = vmatpush1.msra.mxu0 %v1003
      %1069 = vmatprep.subr.mxu0 %v1006
      %1070 = vmatpush1.msra.mxu0 %v1005
      %1071 = vmatprep.subr.mxu0 %v1008
      %1072 = vmatpush1.msra.mxu0 %v1007
      %1073 = vmatprep.subr.mxu0 %v1010
      %1074 = vmatpush1.msra.mxu0 %v1009
      %1075 = vmatprep.subr.mxu0 %v1012
      %1076 = vmatpush1.msra.mxu0 %v1011
      %1077 = vmatprep.subr.mxu0 %v1014
      %1078 = vmatpush1.msra.mxu0 %v1013
      %1079 = vmatprep.subr.mxu0 %v1016
      %1080 = vmatpush1.msra.mxu0 %v1015
      %1081 = vmatprep.subr.mxu0 %v1018
      %1082 = vmatpush1.msra.mxu0 %v1017
      %1083 = vmatprep.subr.mxu0 %v1020
      %1084 = vmatpush1.msra.mxu0 %v1019
      %1085 = vmatprep.mubr.f32.mxu0 %v172
      %1086 = vmatmul.mubr.f32.gmra.mrb[0].mxu0 %v171
      %v1087 = vpop.f32.mrb[0].mxu0
      %v1088 = vadd.f32 0.0, %v1087
      %v1089 = vpop.f32.mrb[0].mxu0
      %v1090 = vadd.f32 0.0, %v1089
      %1091 = vdwg.mxu0
      %1092 = vmatprep.subr.mxu0 0.0
      %1093 = vmatpush1.msra.mxu0 %v173
      %1094 = vmatprep.subr.mxu0 0.0
      %1095 = vmatpush1.msra.mxu0 %v174
      %1096 = vmatprep.subr.mxu0 0.0
      %1097 = vmatpush1.msra.mxu0 %v175
      %1098 = vmatprep.subr.mxu0 0.0
      %1099 = vmatpush1.msra.mxu0 %v176
      %1100 = vmatprep.subr.mxu0 0.0
      %1101 = vmatpush1.msra.mxu0 %v177
      %1102 = vmatprep.subr.mxu0 0.0
      %1103 = vmatpush1.msra.mxu0 %v178
      %1104 = vmatprep.subr.mxu0 0.0
      %1105 = vmatpush1.msra.mxu0 %v179
      %1106 = vmatprep.subr.mxu0 0.0
      %1107 = vmatpush1.msra.mxu0 %v180
      %1108 = vmatprep.subr.mxu0 0.0
      %1109 = vmatpush1.msra.mxu0 %v181
      %1110 = vmatprep.subr.mxu0 0.0
      %1111 = vmatpush1.msra.mxu0 %v182
      %1112 = vmatprep.subr.mxu0 0.0
      %1113 = vmatpush1.msra.mxu0 %v183
      %1114 = vmatprep.subr.mxu0 0.0
      %1115 = vmatpush1.msra.mxu0 %v184
      %1116 = vmatprep.subr.mxu0 0.0
      %1117 = vmatpush1.msra.mxu0 %v185
      %1118 = vmatprep.subr.mxu0 0.0
      %1119 = vmatpush1.msra.mxu0 %v186
      %1120 = vmatprep.subr.mxu0 0.0
      %1121 = vmatpush1.msra.mxu0 %v187
      %1122 = vmatprep.subr.mxu0 0.0
      %1123 = vmatpush1.msra.mxu0 %v188
      %1124 = vmatprep.subr.mxu0 0.0
      %1125 = vmatpush1.msra.mxu0 %v189
      %1126 = vmatprep.subr.mxu0 0.0
      %1127 = vmatpush1.msra.mxu0 %v190
      %1128 = vmatprep.subr.mxu0 0.0
      %1129 = vmatpush1.msra.mxu0 %v191
      %1130 = vmatprep.subr.mxu0 0.0
      %1131 = vmatpush1.msra.mxu0 %v192
      %1132 = vmatprep.subr.mxu0 0.0
      %1133 = vmatpush1.msra.mxu0 %v193
      %1134 = vmatprep.subr.mxu0 0.0
      %1135 = vmatpush1.msra.mxu0 %v194
      %1136 = vmatprep.subr.mxu0 0.0
      %1137 = vmatpush1.msra.mxu0 %v195
      %1138 = vmatprep.subr.mxu0 0.0
      %1139 = vmatpush1.msra.mxu0 %v196
      %1140 = vmatprep.subr.mxu0 0.0
      %1141 = vmatpush1.msra.mxu0 %v197
      %1142 = vmatprep.subr.mxu0 0.0
      %1143 = vmatpush1.msra.mxu0 %v198
      %1144 = vmatprep.subr.mxu0 0.0
      %1145 = vmatpush1.msra.mxu0 %v199
      %1146 = vmatprep.subr.mxu0 0.0
      %1147 = vmatpush1.msra.mxu0 %v200
      %1148 = vmatprep.subr.mxu0 0.0
      %1149 = vmatpush1.msra.mxu0 %v201
      %1150 = vmatprep.subr.mxu0 0.0
      %1151 = vmatpush1.msra.mxu0 %v202
      %1152 = vmatprep.subr.mxu0 0.0
      %1153 = vmatpush1.msra.mxu0 %v203
      %1154 = vmatprep.subr.mxu0 0.0
      %1155 = vmatpush1.msra.mxu0 %v204
      %1156 = vmatprep.mubr.f32.mxu0 %v1090
      %1157 = vmatmul.mubr.f32.gmra.mrb[0].mxu0 %v1088
      %v1158 = vpop.f32.mrb[0].mxu0
      %v1159 = vadd.f32 0.0, %v1158
      %v1160 = vpop.f32.mrb[0].mxu0
      %1161 = vdwg.mxu0
      %s1162 = scalar_lea.vmem %s170, 24
      %1163 = vst.msk [vmem:[%s1162] sm:$0x7f] %vm442, %v1159
      %s1164 = scalar_lea.vmem %s165, 1024
      %v1165 = vld [vmem:[%s1164] sm:$0xff]
      %v1166 = vld [vmem:[%s1164 + $0x8] sm:$0xff]
      %v1167 = vld [vmem:[%s1164 + $0x10] sm:$0xff]
      %v1168 = vld [vmem:[%s1164 + $0x18] sm:$0xff]
      %v1169 = vld [vmem:[%s1164 + $0x20] sm:$0xff]
      %v1170 = vld [vmem:[%s1164 + $0x28] sm:$0xff]
      %v1171 = vld [vmem:[%s1164 + $0x30] sm:$0xff]
      %v1172 = vld [vmem:[%s1164 + $0x38] sm:$0xff]
      %v1173 = vld [vmem:[%s1164 + $0x40] sm:$0xff]
      %v1174 = vld [vmem:[%s1164 + $0x48] sm:$0xff]
      %v1175 = vld [vmem:[%s1164 + $0x50] sm:$0xff]
      %v1176 = vld [vmem:[%s1164 + $0x58] sm:$0xff]
      %v1177 = vld [vmem:[%s1164 + $0x60] sm:$0xff]
      %v1178 = vld [vmem:[%s1164 + $0x68] sm:$0xff]
      %v1179 = vld [vmem:[%s1164 + $0x70] sm:$0xff]
      %v1180 = vld [vmem:[%s1164 + $0x78] sm:$0xff]
      %v1181 = vld [vmem:[%s1164 + $0x80] sm:$0xff]
      %v1182 = vld [vmem:[%s1164 + $0x88] sm:$0xff]
      %v1183 = vld [vmem:[%s1164 + $0x90] sm:$0xff]
      %v1184 = vld [vmem:[%s1164 + $0x98] sm:$0xff]
      %v1185 = vld [vmem:[%s1164 + $0xa0] sm:$0xff]
      %v1186 = vld [vmem:[%s1164 + $0xa8] sm:$0xff]
      %v1187 = vld [vmem:[%s1164 + $0xb0] sm:$0xff]
      %v1188 = vld [vmem:[%s1164 + $0xb8] sm:$0xff]
      %v1189 = vld [vmem:[%s1164 + $0xc0] sm:$0xff]
      %v1190 = vld [vmem:[%s1164 + $0xc8] sm:$0xff]
      %v1191 = vld [vmem:[%s1164 + $0xd0] sm:$0xff]
      %v1192 = vld [vmem:[%s1164 + $0xd8] sm:$0xff]
      %v1193 = vld [vmem:[%s1164 + $0xe0] sm:$0xff]
      %v1194 = vld [vmem:[%s1164 + $0xe8] sm:$0xff]
      %v1195 = vld [vmem:[%s1164 + $0xf0] sm:$0xff]
      %v1196 = vld [vmem:[%s1164 + $0xf8] sm:$0xff]
      %v1197 = vunpack.c.l.bf16 %v1165
      %v1198 = vunpack.c.h.bf16 %v1165
      %v1199 = vunpack.c.l.bf16 %v1166
      %v1200 = vunpack.c.h.bf16 %v1166
      %v1201 = vunpack.c.l.bf16 %v1167
      %v1202 = vunpack.c.h.bf16 %v1167
      %v1203 = vunpack.c.l.bf16 %v1168
      %v1204 = vunpack.c.h.bf16 %v1168
      %v1205 = vunpack.c.l.bf16 %v1169
      %v1206 = vunpack.c.h.bf16 %v1169
      %v1207 = vunpack.c.l.bf16 %v1170
      %v1208 = vunpack.c.h.bf16 %v1170
      %v1209 = vunpack.c.l.bf16 %v1171
      %v1210 = vunpack.c.h.bf16 %v1171
      %v1211 = vunpack.c.l.bf16 %v1172
      %v1212 = vunpack.c.h.bf16 %v1172
      %v1213 = vunpack.c.l.bf16 %v1173
      %v1214 = vunpack.c.h.bf16 %v1173
      %v1215 = vunpack.c.l.bf16 %v1174
      %v1216 = vunpack.c.h.bf16 %v1174
      %v1217 = vunpack.c.l.bf16 %v1175
      %v1218 = vunpack.c.h.bf16 %v1175
      %v1219 = vunpack.c.l.bf16 %v1176
      %v1220 = vunpack.c.h.bf16 %v1176
      %v1221 = vunpack.c.l.bf16 %v1177
      %v1222 = vunpack.c.h.bf16 %v1177
      %v1223 = vunpack.c.l.bf16 %v1178
      %v1224 = vunpack.c.h.bf16 %v1178
      %v1225 = vunpack.c.l.bf16 %v1179
      %v1226 = vunpack.c.h.bf16 %v1179
      %v1227 = vunpack.c.l.bf16 %v1180
      %v1228 = vunpack.c.h.bf16 %v1180
      %v1229 = vunpack.c.l.bf16 %v1181
      %v1230 = vunpack.c.h.bf16 %v1181
      %v1231 = vunpack.c.l.bf16 %v1182
      %v1232 = vunpack.c.h.bf16 %v1182
      %v1233 = vunpack.c.l.bf16 %v1183
      %v1234 = vunpack.c.h.bf16 %v1183
      %v1235 = vunpack.c.l.bf16 %v1184
      %v1236 = vunpack.c.h.bf16 %v1184
      %v1237 = vunpack.c.l.bf16 %v1185
      %v1238 = vunpack.c.h.bf16 %v1185
      %v1239 = vunpack.c.l.bf16 %v1186
      %v1240 = vunpack.c.h.bf16 %v1186
      %v1241 = vunpack.c.l.bf16 %v1187
      %v1242 = vunpack.c.h.bf16 %v1187
      %v1243 = vunpack.c.l.bf16 %v1188
      %v1244 = vunpack.c.h.bf16 %v1188
      %v1245 = vunpack.c.l.bf16 %v1189
      %v1246 = vunpack.c.h.bf16 %v1189
      %v1247 = vunpack.c.l.bf16 %v1190
      %v1248 = vunpack.c.h.bf16 %v1190
      %v1249 = vunpack.c.l.bf16 %v1191
      %v1250 = vunpack.c.h.bf16 %v1191
      %v1251 = vunpack.c.l.bf16 %v1192
      %v1252 = vunpack.c.h.bf16 %v1192
      %v1253 = vunpack.c.l.bf16 %v1193
      %v1254 = vunpack.c.h.bf16 %v1193
      %v1255 = vunpack.c.l.bf16 %v1194
      %v1256 = vunpack.c.h.bf16 %v1194
      %v1257 = vunpack.c.l.bf16 %v1195
      %v1258 = vunpack.c.h.bf16 %v1195
      %v1259 = vunpack.c.l.bf16 %v1196
      %v1260 = vunpack.c.h.bf16 %v1196
      %1261 = vmatprep.subr.mxu0 %v1198
      %1262 = vmatpush1.msra.mxu0 %v1197
      %1263 = vmatprep.subr.mxu0 %v1200
      %1264 = vmatpush1.msra.mxu0 %v1199
      %1265 = vmatprep.subr.mxu0 %v1202
      %1266 = vmatpush1.msra.mxu0 %v1201
      %1267 = vmatprep.subr.mxu0 %v1204
      %1268 = vmatpush1.msra.mxu0 %v1203
      %1269 = vmatprep.subr.mxu0 %v1206
      %1270 = vmatpush1.msra.mxu0 %v1205
      %1271 = vmatprep.subr.mxu0 %v1208
      %1272 = vmatpush1.msra.mxu0 %v1207
      %1273 = vmatprep.subr.mxu0 %v1210
      %1274 = vmatpush1.msra.mxu0 %v1209
      %1275 = vmatprep.subr.mxu0 %v1212
      %1276 = vmatpush1.msra.mxu0 %v1211
      %1277 = vmatprep.subr.mxu0 %v1214
      %1278 = vmatpush1.msra.mxu0 %v1213
      %1279 = vmatprep.subr.mxu0 %v1216
      %1280 = vmatpush1.msra.mxu0 %v1215
      %1281 = vmatprep.subr.mxu0 %v1218
      %1282 = vmatpush1.msra.mxu0 %v1217
      %1283 = vmatprep.subr.mxu0 %v1220
      %1284 = vmatpush1.msra.mxu0 %v1219
      %1285 = vmatprep.subr.mxu0 %v1222
      %1286 = vmatpush1.msra.mxu0 %v1221
      %1287 = vmatprep.subr.mxu0 %v1224
      %1288 = vmatpush1.msra.mxu0 %v1223
      %1289 = vmatprep.subr.mxu0 %v1226
      %1290 = vmatpush1.msra.mxu0 %v1225
      %1291 = vmatprep.subr.mxu0 %v1228
      %1292 = vmatpush1.msra.mxu0 %v1227
      %1293 = vmatprep.subr.mxu0 %v1230
      %1294 = vmatpush1.msra.mxu0 %v1229
      %1295 = vmatprep.subr.mxu0 %v1232
      %1296 = vmatpush1.msra.mxu0 %v1231
      %1297 = vmatprep.subr.mxu0 %v1234
      %1298 = vmatpush1.msra.mxu0 %v1233
      %1299 = vmatprep.subr.mxu0 %v1236
      %1300 = vmatpush1.msra.mxu0 %v1235
      %1301 = vmatprep.subr.mxu0 %v1238
      %1302 = vmatpush1.msra.mxu0 %v1237
      %1303 = vmatprep.subr.mxu0 %v1240
      %1304 = vmatpush1.msra.mxu0 %v1239
      %1305 = vmatprep.subr.mxu0 %v1242
      %1306 = vmatpush1.msra.mxu0 %v1241
      %1307 = vmatprep.subr.mxu0 %v1244
      %1308 = vmatpush1.msra.mxu0 %v1243
      %1309 = vmatprep.subr.mxu0 %v1246
      %1310 = vmatpush1.msra.mxu0 %v1245
      %1311 = vmatprep.subr.mxu0 %v1248
      %1312 = vmatpush1.msra.mxu0 %v1247
      %1313 = vmatprep.subr.mxu0 %v1250
      %1314 = vmatpush1.msra.mxu0 %v1249
      %1315 = vmatprep.subr.mxu0 %v1252
      %1316 = vmatpush1.msra.mxu0 %v1251
      %1317 = vmatprep.subr.mxu0 %v1254
      %1318 = vmatpush1.msra.mxu0 %v1253
      %1319 = vmatprep.subr.mxu0 %v1256
      %1320 = vmatpush1.msra.mxu0 %v1255
      %1321 = vmatprep.subr.mxu0 %v1258
      %1322 = vmatpush1.msra.mxu0 %v1257
      %1323 = vmatprep.subr.mxu0 %v1260
      %1324 = vmatpush1.msra.mxu0 %v1259
      %1325 = vmatprep.mubr.f32.mxu0 %v172
      %1326 = vmatmul.mubr.f32.gmra.mrb[0].mxu0 %v171
      %v1327 = vpop.f32.mrb[0].mxu0
      %v1328 = vadd.f32 0.0, %v1327
      %v1329 = vpop.f32.mrb[0].mxu0
      %v1330 = vadd.f32 0.0, %v1329
      %1331 = vdwg.mxu0
      %1332 = vmatprep.subr.mxu0 0.0
      %1333 = vmatpush1.msra.mxu0 %v173
      %1334 = vmatprep.subr.mxu0 0.0
      %1335 = vmatpush1.msra.mxu0 %v174
      %1336 = vmatprep.subr.mxu0 0.0
      %1337 = vmatpush1.msra.mxu0 %v175
      %1338 = vmatprep.subr.mxu0 0.0
      %1339 = vmatpush1.msra.mxu0 %v176
      %1340 = vmatprep.subr.mxu0 0.0
      %1341 = vmatpush1.msra.mxu0 %v177
      %1342 = vmatprep.subr.mxu0 0.0
      %1343 = vmatpush1.msra.mxu0 %v178
      %1344 = vmatprep.subr.mxu0 0.0
      %1345 = vmatpush1.msra.mxu0 %v179
      %1346 = vmatprep.subr.mxu0 0.0
      %1347 = vmatpush1.msra.mxu0 %v180
      %1348 = vmatprep.subr.mxu0 0.0
      %1349 = vmatpush1.msra.mxu0 %v181
      %1350 = vmatprep.subr.mxu0 0.0
      %1351 = vmatpush1.msra.mxu0 %v182
      %1352 = vmatprep.subr.mxu0 0.0
      %1353 = vmatpush1.msra.mxu0 %v183
      %1354 = vmatprep.subr.mxu0 0.0
      %1355 = vmatpush1.msra.mxu0 %v184
      %1356 = vmatprep.subr.mxu0 0.0
      %1357 = vmatpush1.msra.mxu0 %v185
      %1358 = vmatprep.subr.mxu0 0.0
      %1359 = vmatpush1.msra.mxu0 %v186
      %1360 = vmatprep.subr.mxu0 0.0
      %1361 = vmatpush1.msra.mxu0 %v187
      %1362 = vmatprep.subr.mxu0 0.0
      %1363 = vmatpush1.msra.mxu0 %v188
      %1364 = vmatprep.subr.mxu0 0.0
      %1365 = vmatpush1.msra.mxu0 %v189
      %1366 = vmatprep.subr.mxu0 0.0
      %1367 = vmatpush1.msra.mxu0 %v190
      %1368 = vmatprep.subr.mxu0 0.0
      %1369 = vmatpush1.msra.mxu0 %v191
      %1370 = vmatprep.subr.mxu0 0.0
      %1371 = vmatpush1.msra.mxu0 %v192
      %1372 = vmatprep.subr.mxu0 0.0
      %1373 = vmatpush1.msra.mxu0 %v193
      %1374 = vmatprep.subr.mxu0 0.0
      %1375 = vmatpush1.msra.mxu0 %v194
      %1376 = vmatprep.subr.mxu0 0.0
      %1377 = vmatpush1.msra.mxu0 %v195
      %1378 = vmatprep.subr.mxu0 0.0
      %1379 = vmatpush1.msra.mxu0 %v196
      %1380 = vmatprep.subr.mxu0 0.0
      %1381 = vmatpush1.msra.mxu0 %v197
      %1382 = vmatprep.subr.mxu0 0.0
      %1383 = vmatpush1.msra.mxu0 %v198
      %1384 = vmatprep.subr.mxu0 0.0
      %1385 = vmatpush1.msra.mxu0 %v199
      %1386 = vmatprep.subr.mxu0 0.0
      %1387 = vmatpush1.msra.mxu0 %v200
      %1388 = vmatprep.subr.mxu0 0.0
      %1389 = vmatpush1.msra.mxu0 %v201
      %1390 = vmatprep.subr.mxu0 0.0
      %1391 = vmatpush1.msra.mxu0 %v202
      %1392 = vmatprep.subr.mxu0 0.0
      %1393 = vmatpush1.msra.mxu0 %v203
      %1394 = vmatprep.subr.mxu0 0.0
      %1395 = vmatpush1.msra.mxu0 %v204
      %1396 = vmatprep.mubr.f32.mxu0 %v1330
      %1397 = vmatmul.mubr.f32.gmra.mrb[0].mxu0 %v1328
      %v1398 = vpop.f32.mrb[0].mxu0
      %v1399 = vadd.f32 0.0, %v1398
      %v1400 = vpop.f32.mrb[0].mxu0
      %1401 = vdwg.mxu0
      %s1402 = scalar_lea.vmem %s170, 32
      %1403 = vst.msk [vmem:[%s1402] sm:$0x7f] %vm442, %v1399
      %s1404 = scalar_lea.vmem %s165, 1280
      %v1405 = vld [vmem:[%s1404] sm:$0xff]
      %v1406 = vld [vmem:[%s1404 + $0x8] sm:$0xff]
      %v1407 = vld [vmem:[%s1404 + $0x10] sm:$0xff]
      %v1408 = vld [vmem:[%s1404 + $0x18] sm:$0xff]
      %v1409 = vld [vmem:[%s1404 + $0x20] sm:$0xff]
      %v1410 = vld [vmem:[%s1404 + $0x28] sm:$0xff]
      %v1411 = vld [vmem:[%s1404 + $0x30] sm:$0xff]
      %v1412 = vld [vmem:[%s1404 + $0x38] sm:$0xff]
      %v1413 = vld [vmem:[%s1404 + $0x40] sm:$0xff]
      %v1414 = vld [vmem:[%s1404 + $0x48] sm:$0xff]
      %v1415 = vld [vmem:[%s1404 + $0x50] sm:$0xff]
      %v1416 = vld [vmem:[%s1404 + $0x58] sm:$0xff]
      %v1417 = vld [vmem:[%s1404 + $0x60] sm:$0xff]
      %v1418 = vld [vmem:[%s1404 + $0x68] sm:$0xff]
      %v1419 = vld [vmem:[%s1404 + $0x70] sm:$0xff]
      %v1420 = vld [vmem:[%s1404 + $0x78] sm:$0xff]
      %v1421 = vld [vmem:[%s1404 + $0x80] sm:$0xff]
      %v1422 = vld [vmem:[%s1404 + $0x88] sm:$0xff]
      %v1423 = vld [vmem:[%s1404 + $0x90] sm:$0xff]
      %v1424 = vld [vmem:[%s1404 + $0x98] sm:$0xff]
      %v1425 = vld [vmem:[%s1404 + $0xa0] sm:$0xff]
      %v1426 = vld [vmem:[%s1404 + $0xa8] sm:$0xff]
      %v1427 = vld [vmem:[%s1404 + $0xb0] sm:$0xff]
      %v1428 = vld [vmem:[%s1404 + $0xb8] sm:$0xff]
      %v1429 = vld [vmem:[%s1404 + $0xc0] sm:$0xff]
      %v1430 = vld [vmem:[%s1404 + $0xc8] sm:$0xff]
      %v1431 = vld [vmem:[%s1404 + $0xd0] sm:$0xff]
      %v1432 = vld [vmem:[%s1404 + $0xd8] sm:$0xff]
      %v1433 = vld [vmem:[%s1404 + $0xe0] sm:$0xff]
      %v1434 = vld [vmem:[%s1404 + $0xe8] sm:$0xff]
      %v1435 = vld [vmem:[%s1404 + $0xf0] sm:$0xff]
      %v1436 = vld [vmem:[%s1404 + $0xf8] sm:$0xff]
      %v1437 = vunpack.c.l.bf16 %v1405
      %v1438 = vunpack.c.h.bf16 %v1405
      %v1439 = vunpack.c.l.bf16 %v1406
      %v1440 = vunpack.c.h.bf16 %v1406
      %v1441 = vunpack.c.l.bf16 %v1407
      %v1442 = vunpack.c.h.bf16 %v1407
      %v1443 = vunpack.c.l.bf16 %v1408
      %v1444 = vunpack.c.h.bf16 %v1408
      %v1445 = vunpack.c.l.bf16 %v1409
      %v1446 = vunpack.c.h.bf16 %v1409
      %v1447 = vunpack.c.l.bf16 %v1410
      %v1448 = vunpack.c.h.bf16 %v1410
      %v1449 = vunpack.c.l.bf16 %v1411
      %v1450 = vunpack.c.h.bf16 %v1411
      %v1451 = vunpack.c.l.bf16 %v1412
      %v1452 = vunpack.c.h.bf16 %v1412
      %v1453 = vunpack.c.l.bf16 %v1413
      %v1454 = vunpack.c.h.bf16 %v1413
      %v1455 = vunpack.c.l.bf16 %v1414
      %v1456 = vunpack.c.h.bf16 %v1414
      %v1457 = vunpack.c.l.bf16 %v1415
      %v1458 = vunpack.c.h.bf16 %v1415
      %v1459 = vunpack.c.l.bf16 %v1416
      %v1460 = vunpack.c.h.bf16 %v1416
      %v1461 = vunpack.c.l.bf16 %v1417
      %v1462 = vunpack.c.h.bf16 %v1417
      %v1463 = vunpack.c.l.bf16 %v1418
      %v1464 = vunpack.c.h.bf16 %v1418
      %v1465 = vunpack.c.l.bf16 %v1419
      %v1466 = vunpack.c.h.bf16 %v1419
      %v1467 = vunpack.c.l.bf16 %v1420
      %v1468 = vunpack.c.h.bf16 %v1420
      %v1469 = vunpack.c.l.bf16 %v1421
      %v1470 = vunpack.c.h.bf16 %v1421
      %v1471 = vunpack.c.l.bf16 %v1422
      %v1472 = vunpack.c.h.bf16 %v1422
      %v1473 = vunpack.c.l.bf16 %v1423
      %v1474 = vunpack.c.h.bf16 %v1423
      %v1475 = vunpack.c.l.bf16 %v1424
      %v1476 = vunpack.c.h.bf16 %v1424
      %v1477 = vunpack.c.l.bf16 %v1425
      %v1478 = vunpack.c.h.bf16 %v1425
      %v1479 = vunpack.c.l.bf16 %v1426
      %v1480 = vunpack.c.h.bf16 %v1426
      %v1481 = vunpack.c.l.bf16 %v1427
      %v1482 = vunpack.c.h.bf16 %v1427
      %v1483 = vunpack.c.l.bf16 %v1428
      %v1484 = vunpack.c.h.bf16 %v1428
      %v1485 = vunpack.c.l.bf16 %v1429
      %v1486 = vunpack.c.h.bf16 %v1429
      %v1487 = vunpack.c.l.bf16 %v1430
      %v1488 = vunpack.c.h.bf16 %v1430
      %v1489 = vunpack.c.l.bf16 %v1431
      %v1490 = vunpack.c.h.bf16 %v1431
      %v1491 = vunpack.c.l.bf16 %v1432
      %v1492 = vunpack.c.h.bf16 %v1432
      %v1493 = vunpack.c.l.bf16 %v1433
      %v1494 = vunpack.c.h.bf16 %v1433
      %v1495 = vunpack.c.l.bf16 %v1434
      %v1496 = vunpack.c.h.bf16 %v1434
      %v1497 = vunpack.c.l.bf16 %v1435
      %v1498 = vunpack.c.h.bf16 %v1435
      %v1499 = vunpack.c.l.bf16 %v1436
      %v1500 = vunpack.c.h.bf16 %v1436
      %1501 = vmatprep.subr.mxu0 %v1438
      %1502 = vmatpush1.msra.mxu0 %v1437
      %1503 = vmatprep.subr.mxu0 %v1440
      %1504 = vmatpush1.msra.mxu0 %v1439
      %1505 = vmatprep.subr.mxu0 %v1442
      %1506 = vmatpush1.msra.mxu0 %v1441
      %1507 = vmatprep.subr.mxu0 %v1444
      %1508 = vmatpush1.msra.mxu0 %v1443
      %1509 = vmatprep.subr.mxu0 %v1446
      %1510 = vmatpush1.msra.mxu0 %v1445
      %1511 = vmatprep.subr.mxu0 %v1448
      %1512 = vmatpush1.msra.mxu0 %v1447
      %1513 = vmatprep.subr.mxu0 %v1450
      %1514 = vmatpush1.msra.mxu0 %v1449
      %1515 = vmatprep.subr.mxu0 %v1452
      %1516 = vmatpush1.msra.mxu0 %v1451
      %1517 = vmatprep.subr.mxu0 %v1454
      %1518 = vmatpush1.msra.mxu0 %v1453
      %1519 = vmatprep.subr.mxu0 %v1456
      %1520 = vmatpush1.msra.mxu0 %v1455
      %1521 = vmatprep.subr.mxu0 %v1458
      %1522 = vmatpush1.msra.mxu0 %v1457
      %1523 = vmatprep.subr.mxu0 %v1460
      %1524 = vmatpush1.msra.mxu0 %v1459
      %1525 = vmatprep.subr.mxu0 %v1462
      %1526 = vmatpush1.msra.mxu0 %v1461
      %1527 = vmatprep.subr.mxu0 %v1464
      %1528 = vmatpush1.msra.mxu0 %v1463
      %1529 = vmatprep.subr.mxu0 %v1466
      %1530 = vmatpush1.msra.mxu0 %v1465
      %1531 = vmatprep.subr.mxu0 %v1468
      %1532 = vmatpush1.msra.mxu0 %v1467
      %1533 = vmatprep.subr.mxu0 %v1470
      %1534 = vmatpush1.msra.mxu0 %v1469
      %1535 = vmatprep.subr.mxu0 %v1472
      %1536 = vmatpush1.msra.mxu0 %v1471
      %1537 = vmatprep.subr.mxu0 %v1474
      %1538 = vmatpush1.msra.mxu0 %v1473
      %1539 = vmatprep.subr.mxu0 %v1476
      %1540 = vmatpush1.msra.mxu0 %v1475
      %1541 = vmatprep.subr.mxu0 %v1478
      %1542 = vmatpush1.msra.mxu0 %v1477
      %1543 = vmatprep.subr.mxu0 %v1480
      %1544 = vmatpush1.msra.mxu0 %v1479
      %1545 = vmatprep.subr.mxu0 %v1482
      %1546 = vmatpush1.msra.mxu0 %v1481
      %1547 = vmatprep.subr.mxu0 %v1484
      %1548 = vmatpush1.msra.mxu0 %v1483
      %1549 = vmatprep.subr.mxu0 %v1486
      %1550 = vmatpush1.msra.mxu0 %v1485
      %1551 = vmatprep.subr.mxu0 %v1488
      %1552 = vmatpush1.msra.mxu0 %v1487
      %1553 = vmatprep.subr.mxu0 %v1490
      %1554 = vmatpush1.msra.mxu0 %v1489
      %1555 = vmatprep.subr.mxu0 %v1492
      %1556 = vmatpush1.msra.mxu0 %v1491
      %1557 = vmatprep.subr.mxu0 %v1494
      %1558 = vmatpush1.msra.mxu0 %v1493
      %1559 = vmatprep.subr.mxu0 %v1496
      %1560 = vmatpush1.msra.mxu0 %v1495
      %1561 = vmatprep.subr.mxu0 %v1498
      %1562 = vmatpush1.msra.mxu0 %v1497
      %1563 = vmatprep.subr.mxu0 %v1500
      %1564 = vmatpush1.msra.mxu0 %v1499
      %1565 = vmatprep.mubr.f32.mxu0 %v172
      %1566 = vmatmul.mubr.f32.gmra.mrb[0].mxu0 %v171
      %v1567 = vpop.f32.mrb[0].mxu0
      %v1568 = vadd.f32 0.0, %v1567
      %v1569 = vpop.f32.mrb[0].mxu0
      %v1570 = vadd.f32 0.0, %v1569
      %1571 = vdwg.mxu0
      %1572 = vmatprep.subr.mxu0 0.0
      %1573 = vmatpush1.msra.mxu0 %v173
      %1574 = vmatprep.subr.mxu0 0.0
      %1575 = vmatpush1.msra.mxu0 %v174
      %1576 = vmatprep.subr.mxu0 0.0
      %1577 = vmatpush1.msra.mxu0 %v175
      %1578 = vmatprep.subr.mxu0 0.0
      %1579 = vmatpush1.msra.mxu0 %v176
      %1580 = vmatprep.subr.mxu0 0.0
      %1581 = vmatpush1.msra.mxu0 %v177
      %1582 = vmatprep.subr.mxu0 0.0
      %1583 = vmatpush1.msra.mxu0 %v178
      %1584 = vmatprep.subr.mxu0 0.0
      %1585 = vmatpush1.msra.mxu0 %v179
      %1586 = vmatprep.subr.mxu0 0.0
      %1587 = vmatpush1.msra.mxu0 %v180
      %1588 = vmatprep.subr.mxu0 0.0
      %1589 = vmatpush1.msra.mxu0 %v181
      %1590 = vmatprep.subr.mxu0 0.0
      %1591 = vmatpush1.msra.mxu0 %v182
      %1592 = vmatprep.subr.mxu0 0.0
      %1593 = vmatpush1.msra.mxu0 %v183
      %1594 = vmatprep.subr.mxu0 0.0
      %1595 = vmatpush1.msra.mxu0 %v184
      %1596 = vmatprep.subr.mxu0 0.0
      %1597 = vmatpush1.msra.mxu0 %v185
      %1598 = vmatprep.subr.mxu0 0.0
      %1599 = vmatpush1.msra.mxu0 %v186
      %1600 = vmatprep.subr.mxu0 0.0
      %1601 = vmatpush1.msra.mxu0 %v187
      %1602 = vmatprep.subr.mxu0 0.0
      %1603 = vmatpush1.msra.mxu0 %v188
      %1604 = vmatprep.subr.mxu0 0.0
      %1605 = vmatpush1.msra.mxu0 %v189
      %1606 = vmatprep.subr.mxu0 0.0
      %1607 = vmatpush1.msra.mxu0 %v190
      %1608 = vmatprep.subr.mxu0 0.0
      %1609 = vmatpush1.msra.mxu0 %v191
      %1610 = vmatprep.subr.mxu0 0.0
      %1611 = vmatpush1.msra.mxu0 %v192
      %1612 = vmatprep.subr.mxu0 0.0
      %1613 = vmatpush1.msra.mxu0 %v193
      %1614 = vmatprep.subr.mxu0 0.0
      %1615 = vmatpush1.msra.mxu0 %v194
      %1616 = vmatprep.subr.mxu0 0.0
      %1617 = vmatpush1.msra.mxu0 %v195
      %1618 = vmatprep.subr.mxu0 0.0
      %1619 = vmatpush1.msra.mxu0 %v196
      %1620 = vmatprep.subr.mxu0 0.0
      %1621 = vmatpush1.msra.mxu0 %v197
      %1622 = vmatprep.subr.mxu0 0.0
      %1623 = vmatpush1.msra.mxu0 %v198
      %1624 = vmatprep.subr.mxu0 0.0
      %1625 = vmatpush1.msra.mxu0 %v199
      %1626 = vmatprep.subr.mxu0 0.0
      %1627 = vmatpush1.msra.mxu0 %v200
      %1628 = vmatprep.subr.mxu0 0.0
      %1629 = vmatpush1.msra.mxu0 %v201
      %1630 = vmatprep.subr.mxu0 0.0
      %1631 = vmatpush1.msra.mxu0 %v202
      %1632 = vmatprep.subr.mxu0 0.0
      %1633 = vmatpush1.msra.mxu0 %v203
      %1634 = vmatprep.subr.mxu0 0.0
      %1635 = vmatpush1.msra.mxu0 %v204
      %1636 = vmatprep.mubr.f32.mxu0 %v1570
      %1637 = vmatmul.mubr.f32.gmra.mrb[0].mxu0 %v1568
      %v1638 = vpop.f32.mrb[0].mxu0
      %v1639 = vadd.f32 0.0, %v1638
      %v1640 = vpop.f32.mrb[0].mxu0
      %1641 = vdwg.mxu0
      %s1642 = scalar_lea.vmem %s170, 40
      %1643 = vst.msk [vmem:[%s1642] sm:$0x7f] %vm442, %v1639
      %p1644 = scmp.lt.s32.totalorder %s14, 1
      %s1645 = scalar_select %p1644, %s14, 1
      %s1646 = smul.addr %s1645, 6
      %s1647 = smul.addr %s1646, 8
      %s1648 = scalar_lea.vmem %s3, %s1647
      // Predicated region
      $region33: #{_forward.2} parent=31 // pred_check
        %p1649 = pneg %p100
      $region34: #{_forward.2} parent=31 // pred_check_branch
        %1651 = sbr.rel (%p1649) target = $region36
      $region35: #{_forward.2} parent=31 // pred_region
        _
      $region36: #{_forward.2} parent=31 // pred_fallthru
        _
    $region32: #{_forward.2} parent=5 // pred_fallthru
      _
    %p1652 = scmp.le.s32.totalorder 2, %s9
    // Predicated region
    $region37: #{_forward.2} parent=5 // pred_check
      %p1653 = pneg %p1652
    $region38: #{_forward.2} parent=5 // pred_check_branch
      %1655 = sbr.rel (%p1653) target = $region40
    $region39: #{_forward.2} parent=5 // pred_region
      %s1656 = ssub.s32 %s9, 2
      // Predicated region
      $region41: #{_forward.2} parent=39 // pred_check
        %p1657 = pneg %p106
      $region42: #{_forward.2} parent=39 // pred_check_branch
        %1659 = sbr.rel (%p1657) target = $region44
      $region43: #{_forward.2} parent=39 // pred_region
        %p1660 = scmp.lt.s32.totalorder %s15, 1
        %s1661 = scalar_select %p1660, %s15, 1
        %s1662 = smul.addr %s1661, 6
        %s1663 = smul.addr %s1662, 8
        %s1664 = scalar_lea.vmem %s3, %s1663
      $region44: #{_forward.2} parent=39 // pred_fallthru
        _
    $region40: #{_forward.2} parent=5 // pred_fallthru
      _
  $region6: #{_forward.2} parent=0 // loop_footer
    %s13 = sadd.s32 1, %s9
  $region7: #{_forward.2} parent=0 // loop_footer_branch
    %8 = sbr.rel target = $region3
  $region8: #{_forward.2} parent=0 // loop_exit
    _

// kernel: _forward.3
$region0: #{_forward.3}
  #allocation0 [shape = 'u32[]', space=smem, size = 0x4, offset = 0x4, fixed_abs, tag = 'smem constant byte address 0x4 - core index']
  #allocation1 [shape = 'u32[144,128]{1,0:T(1,128)}', space=vmem, size = 0x12000, scoped, tag = 'internal scratch']
  %s0 = inlined_call_operand.vmem [shape: f32[2,2,147], index: 0, kind: input, shape index: {}]
  %s1 = inlined_call_operand.vmem [shape: f32[147,512], index: 1, kind: input, shape index: {}]
  %s2 = inlined_call_operand.vmem [shape: f32[1,512], index: 2, kind: input, shape index: {}]
  %s3 = inlined_call_operand.hbm [shape: f32[1,1], index: 3, kind: output, shape index: {}]
  %s4 = sld [smem:[#allocation0]]
  $region22: #{_forward.3} parent=0
    _
  %s6 = ssub.s32 1, %s4
  %s7 = scalar_select 0, %s6, %s4
  $region1: #{_forward.3} parent=0
    #allocation2 [shape = 'u8[512]{0}', space=vmem, size = 0x400, scoped, tag = 'output window, operand 0, single buffered']
    #allocation3 [shape = 's32[1]{0}', space=sflag, size = 0x4, scoped, tag = 'scoped memory for _forward.3']
    %8 = vsyncpa [#allocation3], 0
    // Predicated region
    $region2: #{_forward.3} parent=1 // pred_check
      _
    $region3: #{_forward.3} parent=1 // pred_check_branch
      %10 = sbr.rel (0) target = $region5
    $region4: #{_forward.3} parent=1 // pred_region
      _
    $region5: #{_forward.3} parent=1 // pred_fallthru
      _
    // Predicated region
    $region6: #{_forward.3} parent=1 // pred_check
      _
    $region7: #{_forward.3} parent=1 // pred_check_branch
      %12 = sbr.rel (0) target = $region9
    $region8: #{_forward.3} parent=1 // pred_region
      _
    $region9: #{_forward.3} parent=1 // pred_fallthru
      _
    // Predicated region
    $region10: #{_forward.3} parent=1 // pred_check
      _
    $region11: #{_forward.3} parent=1 // pred_check_branch
      %14 = sbr.rel (0) target = $region13
    $region12: #{_forward.3} parent=1 // pred_region
      _
    $region13: #{_forward.3} parent=1 // pred_fallthru
      _
    %v15 = vld [vmem:[%s1] sm:$0xff]
    %v16 = vld [vmem:[%s1 + $0x8] sm:$0xff]
    %v17 = vld [vmem:[%s1 + $0x10] sm:$0xff]
    %v18 = vld [vmem:[%s1 + $0x18] sm:$0xff]
    %v19 = vld [vmem:[%s1 + $0x20] sm:$0xff]
    %v20 = vld [vmem:[%s1 + $0x28] sm:$0xff]
    %v21 = vld [vmem:[%s1 + $0x30] sm:$0xff]
    %v22 = vld [vmem:[%s1 + $0x38] sm:$0xff]
    %v23 = vld [vmem:[%s1 + $0x40] sm:$0xff]
    %v24 = vld [vmem:[%s1 + $0x48] sm:$0xff]
    %v25 = vld [vmem:[%s1 + $0x50] sm:$0xff]
    %v26 = vld [vmem:[%s1 + $0x58] sm:$0xff]
    %v27 = vld [vmem:[%s1 + $0x60] sm:$0xff]
    %v28 = vld [vmem:[%s1 + $0x68] sm:$0xff]
    %v29 = vld [vmem:[%s1 + $0x70] sm:$0xff]
    %v30 = vld [vmem:[%s1 + $0x78] sm:$0xff]
    %v31 = vld [vmem:[%s1 + $0x80] sm:$0xff]
    %v32 = vld [vmem:[%s1 + $0x88] sm:$0xff]
    %v33 = vld [vmem:[%s1 + $0x90] sm:$0xff]
    %v34 = vld [vmem:[%s1 + $0x98] sm:$0xff]
    %v35 = vld [vmem:[%s1 + $0xa0] sm:$0xff]
    %v36 = vld [vmem:[%s1 + $0xa8] sm:$0xff]
    %v37 = vld [vmem:[%s1 + $0xb0] sm:$0xff]
    %v38 = vld [vmem:[%s1 + $0xb8] sm:$0xff]
    %v39 = vld [vmem:[%s1 + $0xc0] sm:$0xff]
    %v40 = vld [vmem:[%s1 + $0xc8] sm:$0xff]
    %v41 = vld [vmem:[%s1 + $0xd0] sm:$0xff]
    %v42 = vld [vmem:[%s1 + $0xd8] sm:$0xff]
    %v43 = vld [vmem:[%s1 + $0xe0] sm:$0xff]
    %v44 = vld [vmem:[%s1 + $0xe8] sm:$0xff]
    %v45 = vld [vmem:[%s1 + $0xf0] sm:$0xff]
    %v46 = vld [vmem:[%s1 + $0xf8] sm:$0xff]
    %v47 = vld [vmem:[%s1 + $0x100] sm:$0xff]
    %v48 = vld [vmem:[%s1 + $0x108] sm:$0xff]
    %v49 = vld [vmem:[%s1 + $0x110] sm:$0xff]
    %v50 = vld [vmem:[%s1 + $0x118] sm:$0xff]
    %v51 = vld [vmem:[%s1 + $0x120] sm:$0xff]
    %v52 = vld [vmem:[%s1 + $0x128] sm:$0xff]
    %v53 = vld [vmem:[%s1 + $0x130] sm:$0xff]
    %v54 = vld [vmem:[%s1 + $0x138] sm:$0xff]
    %v55 = vld [vmem:[%s1 + $0x140] sm:$0xff]
    %v56 = vld [vmem:[%s1 + $0x148] sm:$0xff]
    %v57 = vld [vmem:[%s1 + $0x150] sm:$0xff]
    %v58 = vld [vmem:[%s1 + $0x158] sm:$0xff]
    %v59 = vld [vmem:[%s1 + $0x160] sm:$0xff]
    %v60 = vld [vmem:[%s1 + $0x168] sm:$0xff]
    %v61 = vld [vmem:[%s1 + $0x170] sm:$0xff]
    %v62 = vld [vmem:[%s1 + $0x178] sm:$0xff]
    %v63 = vld [vmem:[%s1 + $0x180] sm:$0xff]
    %v64 = vld [vmem:[%s1 + $0x188] sm:$0xff]
    %v65 = vld [vmem:[%s1 + $0x190] sm:$0xff]
    %v66 = vld [vmem:[%s1 + $0x198] sm:$0xff]
    %v67 = vld [vmem:[%s1 + $0x1a0] sm:$0xff]
    %v68 = vld [vmem:[%s1 + $0x1a8] sm:$0xff]
    %v69 = vld [vmem:[%s1 + $0x1b0] sm:$0xff]
    %v70 = vld [vmem:[%s1 + $0x1b8] sm:$0xff]
    %v71 = vld [vmem:[%s1 + $0x1c0] sm:$0xff]
    %v72 = vld [vmem:[%s1 + $0x1c8] sm:$0xff]
    %v73 = vld [vmem:[%s1 + $0x1d0] sm:$0xff]
    %v74 = vld [vmem:[%s1 + $0x1d8] sm:$0xff]
    %v75 = vld [vmem:[%s1 + $0x1e0] sm:$0xff]
    %v76 = vld [vmem:[%s1 + $0x1e8] sm:$0xff]
    %v77 = vld [vmem:[%s1 + $0x1f0] sm:$0xff]
    %v78 = vld [vmem:[%s1 + $0x1f8] sm:$0xff]
    %v79 = vld [vmem:[%s1 + $0x200] sm:$0xff]
    %v80 = vld [vmem:[%s1 + $0x208] sm:$0xff]
    %v81 = vld [vmem:[%s1 + $0x210] sm:$0xff]
    %v82 = vld [vmem:[%s1 + $0x218] sm:$0xff]
    %v83 = vld [vmem:[%s1 + $0x220] sm:$0xff]
    %v84 = vld [vmem:[%s1 + $0x228] sm:$0xff]
    %v85 = vld [vmem:[%s1 + $0x230] sm:$0xff]
    %v86 = vld [vmem:[%s1 + $0x238] sm:$0xff]
    %v87 = vld [vmem:[%s1 + $0x240] sm:$0x7]
    %v88 = vld [vmem:[%s1 + $0x248] sm:$0x7]
    %v89 = vld [vmem:[%s1 + $0x250] sm:$0x7]
    %v90 = vld [vmem:[%s1 + $0x258] sm:$0x7]
    %v91 = vld [vmem:[%s2] sm:$0xf]
    %v92 = vld [vmem:[%s0] sm:$0xf]
    %v94 = vlaneseq
    %v95 = vshrl.u32 %v94, 7
    %v96 = vsub.s32 0, %v95
    %v97 = vrot.slane %v91, %v96
    %v98 = vlaneseq
    %v99 = vshrl.u32 %v98, 7
    %v100 = vsub.s32 1, %v99
    %v101 = vrot.slane %v91, %v100
    %v102 = vlaneseq
    %v103 = vshrl.u32 %v102, 7
    %v104 = vsub.s32 2, %v103
    %v105 = vrot.slane %v91, %v104
    %v106 = vlaneseq
    %v107 = vshrl.u32 %v106, 7
    %v108 = vsub.s32 3, %v107
    %v109 = vrot.slane %v91, %v108
    %v116 = vunpack.c.l.s4 1983009808
    %v117 = vunpack.c.0.s8 %v116
    %v118 = vlaneseq
    %v119 = vshrl.u32 %v118, 7
    %v120 = vsub.s32 %v117, %v119
    %v121 = vrot.slane %v92, %v120
    %v122 = vcombine.high %v121, %v121
    %vm124 = vcmask 154624
    %v125 = vsel %vm124, %v122, 0
    %vm127 = vcmask 1042432
    %v129 = vsel %vm127, %v87, 0
    %v132 = vsel %vm127, %v88, 0
    %v135 = vsel %vm127, %v89, 0
    %v138 = vsel %vm127, %v90, 0
    %140 = vmatprep.subr.mxu0 %v16
    %141 = vmatpush1.msra.mxu0 %v15
    %142 = vmatprep.subr.mxu0 %v20
    %143 = vmatpush1.msra.mxu0 %v19
    %144 = vmatprep.subr.mxu0 %v24
    %145 = vmatpush1.msra.mxu0 %v23
    %146 = vmatprep.subr.mxu0 %v28
    %147 = vmatpush1.msra.mxu0 %v27
    %148 = vmatprep.subr.mxu0 %v32
    %149 = vmatpush1.msra.mxu0 %v31
    %150 = vmatprep.subr.mxu0 %v36
    %151 = vmatpush1.msra.mxu0 %v35
    %152 = vmatprep.subr.mxu0 %v40
    %153 = vmatpush1.msra.mxu0 %v39
    %154 = vmatprep.subr.mxu0 %v44
    %155 = vmatpush1.msra.mxu0 %v43
    %156 = vmatprep.subr.mxu0 %v48
    %157 = vmatpush1.msra.mxu0 %v47
    %158 = vmatprep.subr.mxu0 %v52
    %159 = vmatpush1.msra.mxu0 %v51
    %160 = vmatprep.subr.mxu0 %v56
    %161 = vmatpush1.msra.mxu0 %v55
    %162 = vmatprep.subr.mxu0 %v60
    %163 = vmatpush1.msra.mxu0 %v59
    %164 = vmatprep.subr.mxu0 %v64
    %165 = vmatpush1.msra.mxu0 %v63
    %166 = vmatprep.subr.mxu0 %v68
    %167 = vmatpush1.msra.mxu0 %v67
    %168 = vmatprep.subr.mxu0 %v72
    %169 = vmatpush1.msra.mxu0 %v71
    %170 = vmatprep.subr.mxu0 %v76
    %171 = vmatpush1.msra.mxu0 %v75
    %172 = vmatprep.subr.mxu0 %v80
    %173 = vmatpush1.msra.mxu0 %v79
    %174 = vmatprep.subr.mxu0 %v84
    %175 = vmatpush1.msra.mxu0 %v83
    %176 = vmatprep.subr.mxu0 %v132
    %177 = vmatpush1.msra.mxu0 %v129
    %178 = vmatprep.subr.mxu0 0.0
    %179 = vmatpush1.msra.mxu0 0.0
    %180 = vmatprep.subr.mxu0 0.0
    %181 = vmatpush1.msra.mxu0 0.0
    %182 = vmatprep.subr.mxu0 0.0
    %183 = vmatpush1.msra.mxu0 0.0
    %184 = vmatprep.subr.mxu0 0.0
    %185 = vmatpush1.msra.mxu0 0.0
    %186 = vmatprep.subr.mxu0 0.0
    %187 = vmatpush1.msra.mxu0 0.0
    %188 = vmatprep.subr.mxu0 0.0
    %189 = vmatpush1.msra.mxu0 0.0
    %190 = vmatprep.subr.mxu0 0.0
    %191 = vmatpush1.msra.mxu0 0.0
    %192 = vmatprep.subr.mxu0 0.0
    %193 = vmatpush1.msra.mxu0 0.0
    %194 = vmatprep.subr.mxu0 0.0
    %195 = vmatpush1.msra.mxu0 0.0
    %196 = vmatprep.subr.mxu0 0.0
    %197 = vmatpush1.msra.mxu0 0.0
    %198 = vmatprep.subr.mxu0 0.0
    %199 = vmatpush1.msra.mxu0 0.0
    %200 = vmatprep.subr.mxu0 0.0
    %201 = vmatpush1.msra.mxu0 0.0
    %202 = vmatprep.subr.mxu0 0.0
    %203 = vmatpush1.msra.mxu0 0.0
    %204 = vmatprep.mubr.f32.mxu0 %v125
    %205 = vmatmul.mubr.f32.gmra.mrb[0].mxu0 %v121
    %v206 = vpop.f32.mrb[0].mxu0
    %v207 = vadd.f32 %v97, %v206
    %v208 = vpop.f32.mrb[0].mxu0
    %v209 = vadd.f32 %v101, %v208
    %210 = vdwg.mxu0
    %211 = vmatprep.subr.mxu0 %v18
    %212 = vmatpush1.msra.mxu0 %v17
    %213 = vmatprep.subr.mxu0 %v22
    %214 = vmatpush1.msra.mxu0 %v21
    %215 = vmatprep.subr.mxu0 %v26
    %216 = vmatpush1.msra.mxu0 %v25
    %217 = vmatprep.subr.mxu0 %v30
    %218 = vmatpush1.msra.mxu0 %v29
    %219 = vmatprep.subr.mxu0 %v34
    %220 = vmatpush1.msra.mxu0 %v33
    %221 = vmatprep.subr.mxu0 %v38
    %222 = vmatpush1.msra.mxu0 %v37
    %223 = vmatprep.subr.mxu0 %v42
    %224 = vmatpush1.msra.mxu0 %v41
    %225 = vmatprep.subr.mxu0 %v46
    %226 = vmatpush1.msra.mxu0 %v45
    %227 = vmatprep.subr.mxu0 %v50
    %228 = vmatpush1.msra.mxu0 %v49
    %229 = vmatprep.subr.mxu0 %v54
    %230 = vmatpush1.msra.mxu0 %v53
    %231 = vmatprep.subr.mxu0 %v58
    %232 = vmatpush1.msra.mxu0 %v57
    %233 = vmatprep.subr.mxu0 %v62
    %234 = vmatpush1.msra.mxu0 %v61
    %235 = vmatprep.subr.mxu0 %v66
    %236 = vmatpush1.msra.mxu0 %v65
    %237 = vmatprep.subr.mxu0 %v70
    %238 = vmatpush1.msra.mxu0 %v69
    %239 = vmatprep.subr.mxu0 %v74
    %240 = vmatpush1.msra.mxu0 %v73
    %241 = vmatprep.subr.mxu0 %v78
    %242 = vmatpush1.msra.mxu0 %v77
    %243 = vmatprep.subr.mxu0 %v82
    %244 = vmatpush1.msra.mxu0 %v81
    %245 = vmatprep.subr.mxu0 %v86
    %246 = vmatpush1.msra.mxu0 %v85
    %247 = vmatprep.subr.mxu0 %v138
    %248 = vmatpush1.msra.mxu0 %v135
    %249 = vmatprep.subr.mxu0 0.0
    %250 = vmatpush1.msra.mxu0 0.0
    %251 = vmatprep.subr.mxu0 0.0
    %252 = vmatpush1.msra.mxu0 0.0
    %253 = vmatprep.subr.mxu0 0.0
    %254 = vmatpush1.msra.mxu0 0.0
    %255 = vmatprep.subr.mxu0 0.0
    %256 = vmatpush1.msra.mxu0 0.0
    %257 = vmatprep.subr.mxu0 0.0
    %258 = vmatpush1.msra.mxu0 0.0
    %259 = vmatprep.subr.mxu0 0.0
    %260 = vmatpush1.msra.mxu0 0.0
    %261 = vmatprep.subr.mxu0 0.0
    %262 = vmatpush1.msra.mxu0 0.0
    %263 = vmatprep.subr.mxu0 0.0
    %264 = vmatpush1.msra.mxu0 0.0
    %265 = vmatprep.subr.mxu0 0.0
    %266 = vmatpush1.msra.mxu0 0.0
    %267 = vmatprep.subr.mxu0 0.0
    %268 = vmatpush1.msra.mxu0 0.0
    %269 = vmatprep.subr.mxu0 0.0
    %270 = vmatpush1.msra.mxu0 0.0
    %271 = vmatprep.subr.mxu0 0.0
    %272 = vmatpush1.msra.mxu0 0.0
    %273 = vmatprep.subr.mxu0 0.0
    %274 = vmatpush1.msra.mxu0 0.0
    %275 = vmatprep.mubr.f32.mxu0 %v125
    %276 = vmatmul.mubr.f32.gmra.mrb[0].mxu0 %v121
    %v277 = vpop.f32.mrb[0].mxu0
    %v278 = vadd.f32 %v105, %v277
    %v279 = vpop.f32.mrb[0].mxu0
    %v280 = vadd.f32 %v109, %v279
    %281 = vdwg.mxu0
    %s282 = scalar_lea.vmem %s0, 4
    %v283 = vld [vmem:[%s282] sm:$0xf]
    %v286 = vunpack.c.l.s4 1983009808
    %v287 = vunpack.c.0.s8 %v286
    %v288 = vlaneseq
    %v289 = vshrl.u32 %v288, 7
    %v290 = vsub.s32 %v287, %v289
    %v291 = vrot.slane %v283, %v290
    %v292 = vcombine.high %v291, %v291
    %v294 = vsel %vm124, %v292, 0
    %296 = vmatprep.subr.mxu0 %v16
    %297 = vmatpush1.msra.mxu0 %v15
    %298 = vmatprep.subr.mxu0 %v20
    %299 = vmatpush1.msra.mxu0 %v19
    %300 = vmatprep.subr.mxu0 %v24
    %301 = vmatpush1.msra.mxu0 %v23
    %302 = vmatprep.subr.mxu0 %v28
    %303 = vmatpush1.msra.mxu0 %v27
    %304 = vmatprep.subr.mxu0 %v32
    %305 = vmatpush1.msra.mxu0 %v31
    %306 = vmatprep.subr.mxu0 %v36
    %307 = vmatpush1.msra.mxu0 %v35
    %308 = vmatprep.subr.mxu0 %v40
    %309 = vmatpush1.msra.mxu0 %v39
    %310 = vmatprep.subr.mxu0 %v44
    %311 = vmatpush1.msra.mxu0 %v43
    %312 = vmatprep.subr.mxu0 %v48
    %313 = vmatpush1.msra.mxu0 %v47
    %314 = vmatprep.subr.mxu0 %v52
    %315 = vmatpush1.msra.mxu0 %v51
    %316 = vmatprep.subr.mxu0 %v56
    %317 = vmatpush1.msra.mxu0 %v55
    %318 = vmatprep.subr.mxu0 %v60
    %319 = vmatpush1.msra.mxu0 %v59
    %320 = vmatprep.subr.mxu0 %v64
    %321 = vmatpush1.msra.mxu0 %v63
    %322 = vmatprep.subr.mxu0 %v68
    %323 = vmatpush1.msra.mxu0 %v67
    %324 = vmatprep.subr.mxu0 %v72
    %325 = vmatpush1.msra.mxu0 %v71
    %326 = vmatprep.subr.mxu0 %v76
    %327 = vmatpush1.msra.mxu0 %v75
    %328 = vmatprep.subr.mxu0 %v80
    %329 = vmatpush1.msra.mxu0 %v79
    %330 = vmatprep.subr.mxu0 %v84
    %331 = vmatpush1.msra.mxu0 %v83
    %332 = vmatprep.subr.mxu0 %v132
    %333 = vmatpush1.msra.mxu0 %v129
    %334 = vmatprep.subr.mxu0 0.0
    %335 = vmatpush1.msra.mxu0 0.0
    %336 = vmatprep.subr.mxu0 0.0
    %337 = vmatpush1.msra.mxu0 0.0
    %338 = vmatprep.subr.mxu0 0.0
    %339 = vmatpush1.msra.mxu0 0.0
    %340 = vmatprep.subr.mxu0 0.0
    %341 = vmatpush1.msra.mxu0 0.0
    %342 = vmatprep.subr.mxu0 0.0
    %343 = vmatpush1.msra.mxu0 0.0
    %344 = vmatprep.subr.mxu0 0.0
    %345 = vmatpush1.msra.mxu0 0.0
    %346 = vmatprep.subr.mxu0 0.0
    %347 = vmatpush1.msra.mxu0 0.0
    %348 = vmatprep.subr.mxu0 0.0
    %349 = vmatpush1.msra.mxu0 0.0
    %350 = vmatprep.subr.mxu0 0.0
    %351 = vmatpush1.msra.mxu0 0.0
    %352 = vmatprep.subr.mxu0 0.0
    %353 = vmatpush1.msra.mxu0 0.0
    %354 = vmatprep.subr.mxu0 0.0
    %355 = vmatpush1.msra.mxu0 0.0
    %356 = vmatprep.subr.mxu0 0.0
    %357 = vmatpush1.msra.mxu0 0.0
    %358 = vmatprep.subr.mxu0 0.0
    %359 = vmatpush1.msra.mxu0 0.0
    %360 = vmatprep.mubr.f32.mxu0 %v294
    %361 = vmatmul.mubr.f32.gmra.mrb[0].mxu0 %v291
    %v362 = vpop.f32.mrb[0].mxu0
    %v363 = vadd.f32 %v97, %v362
    %v364 = vpop.f32.mrb[0].mxu0
    %v365 = vadd.f32 %v101, %v364
    %366 = vdwg.mxu0
    %367 = vmatprep.subr.mxu0 %v18
    %368 = vmatpush1.msra.mxu0 %v17
    %369 = vmatprep.subr.mxu0 %v22
    %370 = vmatpush1.msra.mxu0 %v21
    %371 = vmatprep.subr.mxu0 %v26
    %372 = vmatpush1.msra.mxu0 %v25
    %373 = vmatprep.subr.mxu0 %v30
    %374 = vmatpush1.msra.mxu0 %v29
    %375 = vmatprep.subr.mxu0 %v34
    %376 = vmatpush1.msra.mxu0 %v33
    %377 = vmatprep.subr.mxu0 %v38
    %378 = vmatpush1.msra.mxu0 %v37
    %379 = vmatprep.subr.mxu0 %v42
    %380 = vmatpush1.msra.mxu0 %v41
    %381 = vmatprep.subr.mxu0 %v46
    %382 = vmatpush1.msra.mxu0 %v45
    %383 = vmatprep.subr.mxu0 %v50
    %384 = vmatpush1.msra.mxu0 %v49
    %385 = vmatprep.subr.mxu0 %v54
    %386 = vmatpush1.msra.mxu0 %v53
    %387 = vmatprep.subr.mxu0 %v58
    %388 = vmatpush1.msra.mxu0 %v57
    %389 = vmatprep.subr.mxu0 %v62
    %390 = vmatpush1.msra.mxu0 %v61
    %391 = vmatprep.subr.mxu0 %v66
    %392 = vmatpush1.msra.mxu0 %v65
    %393 = vmatprep.subr.mxu0 %v70
    %394 = vmatpush1.msra.mxu0 %v69
    %395 = vmatprep.subr.mxu0 %v74
    %396 = vmatpush1.msra.mxu0 %v73
    %397 = vmatprep.subr.mxu0 %v78
    %398 = vmatpush1.msra.mxu0 %v77
    %399 = vmatprep.subr.mxu0 %v82
    %400 = vmatpush1.msra.mxu0 %v81
    %401 = vmatprep.subr.mxu0 %v86
    %402 = vmatpush1.msra.mxu0 %v85
    %403 = vmatprep.subr.mxu0 %v138
    %404 = vmatpush1.msra.mxu0 %v135
    %405 = vmatprep.subr.mxu0 0.0
    %406 = vmatpush1.msra.mxu0 0.0
    %407 = vmatprep.subr.mxu0 0.0
    %408 = vmatpush1.msra.mxu0 0.0
    %409 = vmatprep.subr.mxu0 0.0
    %410 = vmatpush1.msra.mxu0 0.0
    %411 = vmatprep.subr.mxu0 0.0
    %412 = vmatpush1.msra.mxu0 0.0
    %413 = vmatprep.subr.mxu0 0.0
    %414 = vmatpush1.msra.mxu0 0.0
    %415 = vmatprep.subr.mxu0 0.0
    %416 = vmatpush1.msra.mxu0 0.0
    %417 = vmatprep.subr.mxu0 0.0
    %418 = vmatpush1.msra.mxu0 0.0
    %419 = vmatprep.subr.mxu0 0.0
    %420 = vmatpush1.msra.mxu0 0.0
    %421 = vmatprep.subr.mxu0 0.0
    %422 = vmatpush1.msra.mxu0 0.0
    %423 = vmatprep.subr.mxu0 0.0
    %424 = vmatpush1.msra.mxu0 0.0
    %425 = vmatprep.subr.mxu0 0.0
    %426 = vmatpush1.msra.mxu0 0.0
    %427 = vmatprep.subr.mxu0 0.0
    %428 = vmatpush1.msra.mxu0 0.0
    %429 = vmatprep.subr.mxu0 0.0
    %430 = vmatpush1.msra.mxu0 0.0
    %431 = vmatprep.mubr.f32.mxu0 %v294
    %432 = vmatmul.mubr.f32.gmra.mrb[0].mxu0 %v291
    %v433 = vpop.f32.mrb[0].mxu0
    %v434 = vadd.f32 %v105, %v433
    %v435 = vpop.f32.mrb[0].mxu0
    %v436 = vadd.f32 %v109, %v435
    %437 = vdwg.mxu0
    %v438 = vmul.f32 %v207, %v207
    %v439 = vmul.f32 %v209, %v209
    %v440 = vmul.f32 %v278, %v278
    %v441 = vmul.f32 %v280, %v280
    %vm442 = vcmask 1041408
    %v443 = vsel %vm442, %v438, 0.0
    %v444 = vsel %vm442, %v439, 0.0
    %v445 = vadd.f32 %v443, %v444
    %v446 = vsel %vm442, %v440, 0.0
    %v447 = vadd.f32 %v445, %v446
    %v448 = vsel %vm442, %v441, 0.0
    %v449 = vadd.f32 %v447, %v448
    %450 = vadd.xlane.f32.xlu0 %v449
    %v451 = vpop.xlane.xlu0 %450
    %v452 = vadd.f32 %v451, 1e-12
    %v453 = vrsqrt.pop %v452
    %v454 = vmul.f32 %v207, %v453
    %v455 = vmul.f32 %v209, %v453
    %v456 = vmul.f32 %v278, %v453
    %v457 = vmul.f32 %v280, %v453
    %v458 = vmul.f32 %v363, %v363
    %v459 = vmul.f32 %v365, %v365
    %v460 = vmul.f32 %v434, %v434
    %v461 = vmul.f32 %v436, %v436
    %v462 = vsel %vm442, %v458, 0.0
    %v463 = vsel %vm442, %v459, 0.0
    %v464 = vadd.f32 %v462, %v463
    %v465 = vsel %vm442, %v460, 0.0
    %v466 = vadd.f32 %v464, %v465
    %v467 = vsel %vm442, %v461, 0.0
    %v468 = vadd.f32 %v466, %v467
    %469 = vadd.xlane.f32.xlu0 %v468
    %v470 = vpop.xlane.xlu0 %469
    %v471 = vadd.f32 %v470, 1e-12
    %v472 = vrsqrt.pop %v471
    %v473 = vmul.f32 %v363, %v472
    %v474 = vmul.f32 %v365, %v472
    %v475 = vmul.f32 %v434, %v472
    %v476 = vmul.f32 %v436, %v472
    %v477 = vmul.f32 %v473, %v454
    %v478 = vmul.f32 %v474, %v455
    %v479 = vmul.f32 %v475, %v456
    %v480 = vmul.f32 %v476, %v457
    %vm481 = vcmask 1040384
    %v482 = vsel %vm481, %v477, 0.0
    %v483 = vsel %vm481, %v478, 0.0
    %v484 = vadd.f32 %v482, %v483
    %v485 = vsel %vm481, %v479, 0.0
    %v486 = vadd.f32 %v484, %v485
    %v487 = vsel %vm481, %v480, 0.0
    %v488 = vadd.f32 %v486, %v487
    %489 = vadd.xlane.f32.xlu0 %v488
    %v490 = vpop.xlane.xlu0 %489
    %v491 = vrot.slane %v490, 4
    %v492 = vadd.f32 %v490, %v491
    %v493 = vrot.slane %v492, 2
    %v494 = vadd.f32 %v492, %v493
    %v495 = vrot.slane %v494, 1
    %v496 = vadd.f32 %v494, %v495
    %s497 = vtos %v496
    %v498 = vstv %s497
    %v499 = vsub.f32 1.0, %v498
    %vm500 = vcmask 0
    %501 = vst.msk [vmem:[#allocation2] sm:$0x1] %vm500, %v499
    // Predicated region
    $region14: #{_forward.3} parent=1 // pred_check
      _
    $region15: #{_forward.3} parent=1 // pred_check_branch
      %503 = sbr.rel (0) target = $region17
    $region16: #{_forward.3} parent=1 // pred_region
      %s505 = ssub.s32 16, 16
      %506 = vsyncadd [#allocation3], %s505
      %s508 = sshll.u32 [#allocation2], 4
      %s509 = int_to_ptr.vmem [resolvable:$true] %s508
      %511 = dma.vmem_to_hbm [thread:$0]  %s509, 16, %s3, [#allocation3]
    $region17: #{_forward.3} parent=1 // pred_fallthru
      _
    // Predicated region
    $region18: #{_forward.3} parent=1 // pred_check
      _
    $region19: #{_forward.3} parent=1 // pred_check_branch
      %513 = sbr.rel (0) target = $region21
    $region20: #{_forward.3} parent=1 // pred_region
      %514 = dma.done [#allocation3], 16
    $region21: #{_forward.3} parent=1 // pred_fallthru
      _
    %515 = vsyncpa [#allocation3], 1

</llo_original>
